<compile_context>
chip_gen: v7x
topology: tpu7x:2x2x1
jax: 0.10.0
libtpu: 0.0.40
codegen_flags: <defaults>
</compile_context>

<pallas_src>
import jax
import jax.numpy as jnp
from jax import lax
from jax.experimental import pallas as pl
from jax.experimental.pallas import tpu as pltpu

HIDDEN = 64          # per-direction GRU hidden size (module uses 256)
D = 2 * HIDDEN       # = GRU input size = sent_hiddens feature size
SEQ = 8
BATCH = 2


# ----------------------------------------------------------------------------
# Single fused kernel: BiGRU recurrence + sentence attention.
# ----------------------------------------------------------------------------
def sent_att_fused_kernel(x_ref, wih_ref, bih_ref, whh_ref, bhh_ref,
                          sw_ref, sb_ref, ctx_ref, out_ref):
    # x_ref   : (S*B, D)   row = s*B + b (time-major flattened)
    # wih_ref : (D, 6H)    columns [r_f r_b z_f z_b n_f n_b], each H wide
    # whh_ref : (2H, 6H)   block-diagonal per direction, same column layout
    # bih/bhh : (1, 6H)
    # sw_ref  : (D, D), sb_ref: (1, D), ctx_ref: (1, D)  (context weight as row)
    # out_ref : (B, D)
    SB, Din = x_ref.shape
    H = Din // 2
    B = out_ref.shape[0]
    S = SB // B

    wih = wih_ref[...]
    bih = bih_ref[...]
    whh = whh_ref[...]
    bhh = bhh_ref[...]

    # (1) All input projections, both directions, all timesteps: one MXU call.
    gi = jnp.dot(x_ref[...], wih, preferred_element_type=jnp.float32) + bih  # (S*B, 6H)

    # (2) Fused bidirectional recurrence: one (B,2H)@(2H,6H) MXU op per step.
    #     h = [h_fwd(t) | h_bwd(S-1-t)] carried as one lane-dense (B, 128) value.
    h = jnp.zeros((B, 2 * H), jnp.float32)
    hsteps = []
    for t in range(S):                                   # static unroll (S fixed)
        gi_f = gi[t * B:(t + 1) * B, :]                  # fwd input gates @ time t
        gi_b = gi[(S - 1 - t) * B:(S - t) * B, :]        # bwd input gates @ time S-1-t
        i_r = jnp.concatenate([gi_f[:, 0 * H:1 * H], gi_b[:, 1 * H:2 * H]], axis=-1)
        i_z = jnp.concatenate([gi_f[:, 2 * H:3 * H], gi_b[:, 3 * H:4 * H]], axis=-1)
        i_n = jnp.concatenate([gi_f[:, 4 * H:5 * H], gi_b[:, 5 * H:6 * H]], axis=-1)

        gh = jnp.dot(h, whh, preferred_element_type=jnp.float32) + bhh      # (B, 6H)
        h_r = gh[:, 0:2 * H]
        h_z = gh[:, 2 * H:4 * H]
        h_n = gh[:, 4 * H:6 * H]

        r = jax.nn.sigmoid(i_r + h_r)
        z = jax.nn.sigmoid(i_z + h_z)
        n = jnp.tanh(i_n + r * h_n)
        h = (1.0 - z) * n + z * h
        hsteps.append(h)

    # (3) Time-aligned bidirectional hidden sequence (lane-dense 128-wide rows).
    h_time = [jnp.concatenate([hsteps[s][:, :H], hsteps[S - 1 - s][:, H:]], axis=-1)
              for s in range(S)]                         # S x (B, 2H)
    hseq = jnp.concatenate(h_time, axis=0)               # (S*B, 2H)

    # (4) Attention: one (S*B,D)@(D,D) matmul; context matvec on VPU + lane reduce.
    sw = sw_ref[...]
    sb = sb_ref[...]
    ctx = ctx_ref[...]
    uit = jnp.tanh(jnp.dot(hseq, sw, preferred_element_type=jnp.float32) + sb)  # (S*B, D)
    sc = jnp.tanh(jnp.sum(uit * ctx, axis=-1, keepdims=True))                   # (S*B, 1)
    scores = jnp.concatenate([sc[t * B:(t + 1) * B, :] for t in range(S)],
                             axis=1)                                             # (B, S)

    m = jnp.max(scores, axis=-1, keepdims=True)
    e = jnp.exp(scores - m)
    alpha = e / jnp.sum(e, axis=-1, keepdims=True)       # softmax over S per batch

    acc = alpha[:, 0:1] * h_time[0]
    for s in range(1, S):
        acc = acc + alpha[:, s:s + 1] * h_time[s]
    out_ref[...] = acc                                    # (B, 2H)


# ----------------------------------------------------------------------------
# Host-side one-time weight packing (gate + direction fusion).
# ----------------------------------------------------------------------------
def pack_params(p):
    H = p["wih_f"].shape[-1]
    zH = jnp.zeros((H, H), jnp.float32)
    # Input-hidden: dense (D, 6H) — both directions read the same x rows.
    wih_all = jnp.concatenate(
        [jnp.concatenate([p["wih_f"][g], p["wih_b"][g]], axis=1) for g in range(3)],
        axis=1)
    # Hidden-hidden: block-diagonal (2H, 6H) — h_fwd feeds fwd cols, h_bwd bwd cols.
    whh_all = jnp.concatenate(
        [jnp.concatenate(
            [jnp.concatenate([p["whh_f"][g], zH], axis=1),
             jnp.concatenate([zH, p["whh_b"][g]], axis=1)], axis=0)
         for g in range(3)], axis=1)
    bih_all = jnp.concatenate(
        [jnp.concatenate([p["bih_f"][g], p["bih_b"][g]], axis=1) for g in range(3)],
        axis=1)
    bhh_all = jnp.concatenate(
        [jnp.concatenate([p["bhh_f"][g], p["bhh_b"][g]], axis=1) for g in range(3)],
        axis=1)
    return dict(wih=wih_all, bih=bih_all, whh=whh_all, bhh=bhh_all,
                sw=p["sent_weight"], sb=p["sent_bias"],
                ctx=jnp.transpose(p["context_weight"]))      # (1, D) row


@jax.jit
def sent_att_forward(x, q):
    """x: (S, B, 2*HIDDEN) time-major (like the PyTorch module's input)."""
    S, B, Dd = x.shape
    x_flat = x.reshape(S * B, Dd)                            # metadata-only reshape
    vmem = pl.BlockSpec(memory_space=pltpu.MemorySpace.VMEM)
    return pl.pallas_call(
        sent_att_fused_kernel,
        out_shape=jax.ShapeDtypeStruct((B, Dd), jnp.float32),
        in_specs=[vmem] * 8,
        out_specs=vmem,
    )(x_flat, q["wih"], q["bih"], q["whh"], q["bhh"], q["sw"], q["sb"], q["ctx"])


# ----------------------------------------------------------------------------
# Deterministic synthetic parameters (matches the module's shapes).
# ----------------------------------------------------------------------------
def init_params(key, hidden):
    d = 2 * hidden
    ks = jax.random.split(key, 11)
    std = 0.05
    bound = 1.0 / (hidden ** 0.5)          # PyTorch nn.GRU default uniform bound

    def unif(k, shape):
        return jax.random.uniform(k, shape, jnp.float32, -bound, bound)

    return dict(
        sent_weight=(std * jax.random.normal(ks[0], (d, d))).astype(jnp.float32),
        # NOTE: PyTorch leaves sent_bias uninitialized; we init it deterministically.
        sent_bias=(std * jax.random.normal(ks[1], (1, d))).astype(jnp.float32),
        context_weight=(std * jax.random.normal(ks[2], (d, 1))).astype(jnp.float32),
        wih_f=unif(ks[3], (3, d, hidden)),
        whh_f=unif(ks[4], (3, hidden, hidden)),
        bih_f=unif(ks[5], (3, 1, hidden)),
        bhh_f=unif(ks[6], (3, 1, hidden)),
        wih_b=unif(ks[7], (3, d, hidden)),
        whh_b=unif(ks[8], (3, hidden, hidden)),
        bih_b=unif(ks[9], (3, 1, hidden)),
        bhh_b=unif(ks[10], (3, 1, hidden)),
    )


# ----------------------------------------------------------------------------
# Pure-JAX reference (same math) for a correctness sanity check.
# ----------------------------------------------------------------------------
def ref_forward(x, p):
    S, B, _ = x.shape
    H = p["wih_f"].shape[-1]

    def cell(x_t, h, wih, whh, bih, bhh):
        gi = [jnp.dot(x_t, wih[i]) + bih[i] for i in range(3)]
        gh = [jnp.dot(h, whh[i]) + bhh[i] for i in range(3)]
        r = jax.nn.sigmoid(gi[0] + gh[0])
        z = jax.nn.sigmoid(gi[1] + gh[1])
        n = jnp.tanh(gi[2] + r * gh[2])
        return (1.0 - z) * n + z * h

    def run(xs, wih, whh, bih, bhh):
        def step(h, x_t):
            h = cell(x_t, h, wih, whh, bih, bhh)
            return h, h
        _, ys = lax.scan(step, jnp.zeros((B, H), jnp.float32), xs)
        return ys

    hf = run(x, p["wih_f"], p["whh_f"], p["bih_f"], p["bhh_f"])
    hb = run(x[::-1], p["wih_b"], p["whh_b"], p["bih_b"], p["bhh_b"])[::-1]
    hseq = jnp.concatenate([hf, hb], axis=-1)                          # (S, B, D)
    uit = jnp.tanh(jnp.einsum("sbd,de->sbe", hseq, p["sent_weight"]) + p["sent_bias"])
    scores = jnp.tanh(jnp.einsum("sbd,dk->sbk", uit, p["context_weight"]))[:, :, 0]
    alpha = jax.nn.softmax(scores, axis=0)                             # softmax over S
    return jnp.sum(alpha[:, :, None] * hseq, axis=0)                   # (B, D)


if __name__ == "__main__":
    key = jax.random.PRNGKey(0)
    kx, kp = jax.random.split(key)
    x = jax.random.normal(kx, (SEQ, BATCH, D), jnp.float32)   # (seq, batch, 2*hidden)
    params = init_params(kp, HIDDEN)
    packed = pack_params(params)

    out = jax.block_until_ready(sent_att_forward(x, packed))
    ref = jax.block_until_ready(ref_forward(x, params))

    assert out.shape == (BATCH, D), out.shape
    assert bool(jnp.all(jnp.isfinite(out)))
    assert bool(jnp.allclose(out, ref, atol=2e-2, rtol=2e-2)), \
        float(jnp.max(jnp.abs(out - ref)))
    print("KERNEL_OK")
</pallas_src>

<mosaic_0001>
module attributes {stable_mosaic.version = 11 : i64} {
  func.func @sent_att_fused_kernel(%arg0: memref<16x128xf32, #tpu.memory_space<vmem>>, %arg1: memref<128x384xf32, #tpu.memory_space<vmem>>, %arg2: memref<1x384xf32, #tpu.memory_space<vmem>>, %arg3: memref<128x384xf32, #tpu.memory_space<vmem>>, %arg4: memref<1x384xf32, #tpu.memory_space<vmem>>, %arg5: memref<128x128xf32, #tpu.memory_space<vmem>>, %arg6: memref<1x128xf32, #tpu.memory_space<vmem>>, %arg7: memref<1x128xf32, #tpu.memory_space<vmem>>, %arg8: memref<2x128xf32, #tpu.memory_space<vmem>>) attributes {dimension_semantics = [], scalar_prefetch = 0 : i64, scratch_operands = 0 : i64, tpu.core_type = #tpu.core_type<tc>} {
    %c0 = arith.constant 0 : index
    %c0_0 = arith.constant 0 : index
    %0 = vector.load %arg1[%c0, %c0_0] : memref<128x384xf32, #tpu.memory_space<vmem>>, vector<128x384xf32>
    %c0_1 = arith.constant 0 : index
    %c0_2 = arith.constant 0 : index
    %1 = vector.load %arg2[%c0_1, %c0_2] : memref<1x384xf32, #tpu.memory_space<vmem>>, vector<1x384xf32>
    %c0_3 = arith.constant 0 : index
    %c0_4 = arith.constant 0 : index
    %2 = vector.load %arg3[%c0_3, %c0_4] : memref<128x384xf32, #tpu.memory_space<vmem>>, vector<128x384xf32>
    %c0_5 = arith.constant 0 : index
    %c0_6 = arith.constant 0 : index
    %3 = vector.load %arg4[%c0_5, %c0_6] : memref<1x384xf32, #tpu.memory_space<vmem>>, vector<1x384xf32>
    %c0_7 = arith.constant 0 : index
    %c0_8 = arith.constant 0 : index
    %4 = vector.load %arg0[%c0_7, %c0_8] : memref<16x128xf32, #tpu.memory_space<vmem>>, vector<16x128xf32>
    %cst = arith.constant dense<0.000000e+00> : vector<16x384xf32>
    %5 = tpu.matmul %4, %0, %cst {dimension_numbers = #tpu.dot_dimension_numbers<[1], [0], [0], [1], [0, 0, 1, 1], [], []>} : vector<16x128xf32>, vector<128x384xf32>, vector<16x384xf32> -> vector<16x384xf32>
    %6 = vector.broadcast %1 : vector<1x384xf32> to vector<16x384xf32>
    %7 = arith.addf %5, %6 : vector<16x384xf32>
    %cst_9 = arith.constant 0.000000e+00 : f32
    %8 = vector.broadcast %cst_9 : f32 to vector<2x128xf32>
    %9 = vector.extract_strided_slice %7 {offsets = [0, 0], sizes = [2, 384], strides = [1, 1]} : vector<16x384xf32> to vector<2x384xf32>
    %10 = vector.extract_strided_slice %7 {offsets = [14, 0], sizes = [2, 384], strides = [1, 1]} : vector<16x384xf32> to vector<2x384xf32>
    %11 = vector.extract_strided_slice %9 {offsets = [0, 0], sizes = [2, 64], strides = [1, 1]} : vector<2x384xf32> to vector<2x64xf32>
    %12 = vector.extract_strided_slice %10 {offsets = [0, 64], sizes = [2, 64], strides = [1, 1]} : vector<2x384xf32> to vector<2x64xf32>
    %13 = tpu.concatenate %11, %12 in 1 : vector<2x64xf32>, vector<2x64xf32> -> vector<2x128xf32>
    %14 = vector.extract_strided_slice %9 {offsets = [0, 128], sizes = [2, 64], strides = [1, 1]} : vector<2x384xf32> to vector<2x64xf32>
    %15 = vector.extract_strided_slice %10 {offsets = [0, 192], sizes = [2, 64], strides = [1, 1]} : vector<2x384xf32> to vector<2x64xf32>
    %16 = tpu.concatenate %14, %15 in 1 : vector<2x64xf32>, vector<2x64xf32> -> vector<2x128xf32>
    %17 = vector.extract_strided_slice %9 {offsets = [0, 256], sizes = [2, 64], strides = [1, 1]} : vector<2x384xf32> to vector<2x64xf32>
    %18 = vector.extract_strided_slice %10 {offsets = [0, 320], sizes = [2, 64], strides = [1, 1]} : vector<2x384xf32> to vector<2x64xf32>
    %19 = tpu.concatenate %17, %18 in 1 : vector<2x64xf32>, vector<2x64xf32> -> vector<2x128xf32>
    %cst_10 = arith.constant dense<0.000000e+00> : vector<2x384xf32>
    %20 = tpu.matmul %8, %2, %cst_10 {dimension_numbers = #tpu.dot_dimension_numbers<[1], [0], [0], [1], [0, 0, 1, 1], [], []>} : vector<2x128xf32>, vector<128x384xf32>, vector<2x384xf32> -> vector<2x384xf32>
    %21 = vector.broadcast %3 : vector<1x384xf32> to vector<2x384xf32>
    %22 = arith.addf %20, %21 : vector<2x384xf32>
    %23 = vector.extract_strided_slice %22 {offsets = [0, 0], sizes = [2, 128], strides = [1, 1]} : vector<2x384xf32> to vector<2x128xf32>
    %24 = vector.extract_strided_slice %22 {offsets = [0, 128], sizes = [2, 128], strides = [1, 1]} : vector<2x384xf32> to vector<2x128xf32>
    %25 = vector.extract_strided_slice %22 {offsets = [0, 256], sizes = [2, 128], strides = [1, 1]} : vector<2x384xf32> to vector<2x128xf32>
    %26 = arith.addf %13, %23 : vector<2x128xf32>
    %27 = arith.negf %26 : vector<2x128xf32>
    %28 = math.exp %27 : vector<2x128xf32>
    %cst_11 = arith.constant 1.000000e+00 : f32
    %29 = vector.broadcast %cst_11 : f32 to vector<2x128xf32>
    %30 = arith.addf %29, %28 : vector<2x128xf32>
    %31 = arith.divf %29, %30 : vector<2x128xf32>
    %32 = arith.addf %16, %24 : vector<2x128xf32>
    %33 = arith.negf %32 : vector<2x128xf32>
    %34 = math.exp %33 : vector<2x128xf32>
    %cst_12 = arith.constant 1.000000e+00 : f32
    %35 = vector.broadcast %cst_12 : f32 to vector<2x128xf32>
    %36 = arith.addf %35, %34 : vector<2x128xf32>
    %37 = arith.divf %35, %36 : vector<2x128xf32>
    %38 = arith.mulf %31, %25 : vector<2x128xf32>
    %39 = arith.addf %19, %38 : vector<2x128xf32>
    %40 = math.tanh %39 : vector<2x128xf32>
    %cst_13 = arith.constant 1.000000e+00 : f32
    %41 = vector.broadcast %cst_13 : f32 to vector<2x128xf32>
    %42 = arith.subf %41, %37 : vector<2x128xf32>
    %43 = arith.mulf %42, %40 : vector<2x128xf32>
    %44 = arith.mulf %37, %8 : vector<2x128xf32>
    %45 = arith.addf %43, %44 : vector<2x128xf32>
    %46 = vector.extract_strided_slice %7 {offsets = [2, 0], sizes = [2, 384], strides = [1, 1]} : vector<16x384xf32> to vector<2x384xf32>
    %47 = vector.extract_strided_slice %7 {offsets = [12, 0], sizes = [2, 384], strides = [1, 1]} : vector<16x384xf32> to vector<2x384xf32>
    %48 = vector.extract_strided_slice %46 {offsets = [0, 0], sizes = [2, 64], strides = [1, 1]} : vector<2x384xf32> to vector<2x64xf32>
    %49 = vector.extract_strided_slice %47 {offsets = [0, 64], sizes = [2, 64], strides = [1, 1]} : vector<2x384xf32> to vector<2x64xf32>
    %50 = tpu.concatenate %48, %49 in 1 : vector<2x64xf32>, vector<2x64xf32> -> vector<2x128xf32>
    %51 = vector.extract_strided_slice %46 {offsets = [0, 128], sizes = [2, 64], strides = [1, 1]} : vector<2x384xf32> to vector<2x64xf32>
    %52 = vector.extract_strided_slice %47 {offsets = [0, 192], sizes = [2, 64], strides = [1, 1]} : vector<2x384xf32> to vector<2x64xf32>
    %53 = tpu.concatenate %51, %52 in 1 : vector<2x64xf32>, vector<2x64xf32> -> vector<2x128xf32>
    %54 = vector.extract_strided_slice %46 {offsets = [0, 256], sizes = [2, 64], strides = [1, 1]} : vector<2x384xf32> to vector<2x64xf32>
    %55 = vector.extract_strided_slice %47 {offsets = [0, 320], sizes = [2, 64], strides = [1, 1]} : vector<2x384xf32> to vector<2x64xf32>
    %56 = tpu.concatenate %54, %55 in 1 : vector<2x64xf32>, vector<2x64xf32> -> vector<2x128xf32>
    %cst_14 = arith.constant dense<0.000000e+00> : vector<2x384xf32>
    %57 = tpu.matmul %45, %2, %cst_14 {dimension_numbers = #tpu.dot_dimension_numbers<[1], [0], [0], [1], [0, 0, 1, 1], [], []>} : vector<2x128xf32>, vector<128x384xf32>, vector<2x384xf32> -> vector<2x384xf32>
    %58 = vector.broadcast %3 : vector<1x384xf32> to vector<2x384xf32>
    %59 = arith.addf %57, %58 : vector<2x384xf32>
    %60 = vector.extract_strided_slice %59 {offsets = [0, 0], sizes = [2, 128], strides = [1, 1]} : vector<2x384xf32> to vector<2x128xf32>
    %61 = vector.extract_strided_slice %59 {offsets = [0, 128], sizes = [2, 128], strides = [1, 1]} : vector<2x384xf32> to vector<2x128xf32>
    %62 = vector.extract_strided_slice %59 {offsets = [0, 256], sizes = [2, 128], strides = [1, 1]} : vector<2x384xf32> to vector<2x128xf32>
    %63 = arith.addf %50, %60 : vector<2x128xf32>
    %64 = arith.negf %63 : vector<2x128xf32>
    %65 = math.exp %64 : vector<2x128xf32>
    %cst_15 = arith.constant 1.000000e+00 : f32
    %66 = vector.broadcast %cst_15 : f32 to vector<2x128xf32>
    %67 = arith.addf %66, %65 : vector<2x128xf32>
    %68 = arith.divf %66, %67 : vector<2x128xf32>
    %69 = arith.addf %53, %61 : vector<2x128xf32>
    %70 = arith.negf %69 : vector<2x128xf32>
    %71 = math.exp %70 : vector<2x128xf32>
    %cst_16 = arith.constant 1.000000e+00 : f32
    %72 = vector.broadcast %cst_16 : f32 to vector<2x128xf32>
    %73 = arith.addf %72, %71 : vector<2x128xf32>
    %74 = arith.divf %72, %73 : vector<2x128xf32>
    %75 = arith.mulf %68, %62 : vector<2x128xf32>
    %76 = arith.addf %56, %75 : vector<2x128xf32>
    %77 = math.tanh %76 : vector<2x128xf32>
    %cst_17 = arith.constant 1.000000e+00 : f32
    %78 = vector.broadcast %cst_17 : f32 to vector<2x128xf32>
    %79 = arith.subf %78, %74 : vector<2x128xf32>
    %80 = arith.mulf %79, %77 : vector<2x128xf32>
    %81 = arith.mulf %74, %45 : vector<2x128xf32>
    %82 = arith.addf %80, %81 : vector<2x128xf32>
    %83 = vector.extract_strided_slice %7 {offsets = [4, 0], sizes = [2, 384], strides = [1, 1]} : vector<16x384xf32> to vector<2x384xf32>
    %84 = vector.extract_strided_slice %7 {offsets = [10, 0], sizes = [2, 384], strides = [1, 1]} : vector<16x384xf32> to vector<2x384xf32>
    %85 = vector.extract_strided_slice %83 {offsets = [0, 0], sizes = [2, 64], strides = [1, 1]} : vector<2x384xf32> to vector<2x64xf32>
    %86 = vector.extract_strided_slice %84 {offsets = [0, 64], sizes = [2, 64], strides = [1, 1]} : vector<2x384xf32> to vector<2x64xf32>
    %87 = tpu.concatenate %85, %86 in 1 : vector<2x64xf32>, vector<2x64xf32> -> vector<2x128xf32>
    %88 = vector.extract_strided_slice %83 {offsets = [0, 128], sizes = [2, 64], strides = [1, 1]} : vector<2x384xf32> to vector<2x64xf32>
    %89 = vector.extract_strided_slice %84 {offsets = [0, 192], sizes = [2, 64], strides = [1, 1]} : vector<2x384xf32> to vector<2x64xf32>
    %90 = tpu.concatenate %88, %89 in 1 : vector<2x64xf32>, vector<2x64xf32> -> vector<2x128xf32>
    %91 = vector.extract_strided_slice %83 {offsets = [0, 256], sizes = [2, 64], strides = [1, 1]} : vector<2x384xf32> to vector<2x64xf32>
    %92 = vector.extract_strided_slice %84 {offsets = [0, 320], sizes = [2, 64], strides = [1, 1]} : vector<2x384xf32> to vector<2x64xf32>
    %93 = tpu.concatenate %91, %92 in 1 : vector<2x64xf32>, vector<2x64xf32> -> vector<2x128xf32>
    %cst_18 = arith.constant dense<0.000000e+00> : vector<2x384xf32>
    %94 = tpu.matmul %82, %2, %cst_18 {dimension_numbers = #tpu.dot_dimension_numbers<[1], [0], [0], [1], [0, 0, 1, 1], [], []>} : vector<2x128xf32>, vector<128x384xf32>, vector<2x384xf32> -> vector<2x384xf32>
    %95 = vector.broadcast %3 : vector<1x384xf32> to vector<2x384xf32>
    %96 = arith.addf %94, %95 : vector<2x384xf32>
    %97 = vector.extract_strided_slice %96 {offsets = [0, 0], sizes = [2, 128], strides = [1, 1]} : vector<2x384xf32> to vector<2x128xf32>
    %98 = vector.extract_strided_slice %96 {offsets = [0, 128], sizes = [2, 128], strides = [1, 1]} : vector<2x384xf32> to vector<2x128xf32>
    %99 = vector.extract_strided_slice %96 {offsets = [0, 256], sizes = [2, 128], strides = [1, 1]} : vector<2x384xf32> to vector<2x128xf32>
    %100 = arith.addf %87, %97 : vector<2x128xf32>
    %101 = arith.negf %100 : vector<2x128xf32>
    %102 = math.exp %101 : vector<2x128xf32>
    %cst_19 = arith.constant 1.000000e+00 : f32
    %103 = vector.broadcast %cst_19 : f32 to vector<2x128xf32>
    %104 = arith.addf %103, %102 : vector<2x128xf32>
    %105 = arith.divf %103, %104 : vector<2x128xf32>
    %106 = arith.addf %90, %98 : vector<2x128xf32>
    %107 = arith.negf %106 : vector<2x128xf32>
    %108 = math.exp %107 : vector<2x128xf32>
    %cst_20 = arith.constant 1.000000e+00 : f32
    %109 = vector.broadcast %cst_20 : f32 to vector<2x128xf32>
    %110 = arith.addf %109, %108 : vector<2x128xf32>
    %111 = arith.divf %109, %110 : vector<2x128xf32>
    %112 = arith.mulf %105, %99 : vector<2x128xf32>
    %113 = arith.addf %93, %112 : vector<2x128xf32>
    %114 = math.tanh %113 : vector<2x128xf32>
    %cst_21 = arith.constant 1.000000e+00 : f32
    %115 = vector.broadcast %cst_21 : f32 to vector<2x128xf32>
    %116 = arith.subf %115, %111 : vector<2x128xf32>
    %117 = arith.mulf %116, %114 : vector<2x128xf32>
    %118 = arith.mulf %111, %82 : vector<2x128xf32>
    %119 = arith.addf %117, %118 : vector<2x128xf32>
    %120 = vector.extract_strided_slice %7 {offsets = [6, 0], sizes = [2, 384], strides = [1, 1]} : vector<16x384xf32> to vector<2x384xf32>
    %121 = vector.extract_strided_slice %7 {offsets = [8, 0], sizes = [2, 384], strides = [1, 1]} : vector<16x384xf32> to vector<2x384xf32>
    %122 = vector.extract_strided_slice %120 {offsets = [0, 0], sizes = [2, 64], strides = [1, 1]} : vector<2x384xf32> to vector<2x64xf32>
    %123 = vector.extract_strided_slice %121 {offsets = [0, 64], sizes = [2, 64], strides = [1, 1]} : vector<2x384xf32> to vector<2x64xf32>
    %124 = tpu.concatenate %122, %123 in 1 : vector<2x64xf32>, vector<2x64xf32> -> vector<2x128xf32>
    %125 = vector.extract_strided_slice %120 {offsets = [0, 128], sizes = [2, 64], strides = [1, 1]} : vector<2x384xf32> to vector<2x64xf32>
    %126 = vector.extract_strided_slice %121 {offsets = [0, 192], sizes = [2, 64], strides = [1, 1]} : vector<2x384xf32> to vector<2x64xf32>
    %127 = tpu.concatenate %125, %126 in 1 : vector<2x64xf32>, vector<2x64xf32> -> vector<2x128xf32>
    %128 = vector.extract_strided_slice %120 {offsets = [0, 256], sizes = [2, 64], strides = [1, 1]} : vector<2x384xf32> to vector<2x64xf32>
    %129 = vector.extract_strided_slice %121 {offsets = [0, 320], sizes = [2, 64], strides = [1, 1]} : vector<2x384xf32> to vector<2x64xf32>
    %130 = tpu.concatenate %128, %129 in 1 : vector<2x64xf32>, vector<2x64xf32> -> vector<2x128xf32>
    %cst_22 = arith.constant dense<0.000000e+00> : vector<2x384xf32>
    %131 = tpu.matmul %119, %2, %cst_22 {dimension_numbers = #tpu.dot_dimension_numbers<[1], [0], [0], [1], [0, 0, 1, 1], [], []>} : vector<2x128xf32>, vector<128x384xf32>, vector<2x384xf32> -> vector<2x384xf32>
    %132 = vector.broadcast %3 : vector<1x384xf32> to vector<2x384xf32>
    %133 = arith.addf %131, %132 : vector<2x384xf32>
    %134 = vector.extract_strided_slice %133 {offsets = [0, 0], sizes = [2, 128], strides = [1, 1]} : vector<2x384xf32> to vector<2x128xf32>
    %135 = vector.extract_strided_slice %133 {offsets = [0, 128], sizes = [2, 128], strides = [1, 1]} : vector<2x384xf32> to vector<2x128xf32>
    %136 = vector.extract_strided_slice %133 {offsets = [0, 256], sizes = [2, 128], strides = [1, 1]} : vector<2x384xf32> to vector<2x128xf32>
    %137 = arith.addf %124, %134 : vector<2x128xf32>
    %138 = arith.negf %137 : vector<2x128xf32>
    %139 = math.exp %138 : vector<2x128xf32>
    %cst_23 = arith.constant 1.000000e+00 : f32
    %140 = vector.broadcast %cst_23 : f32 to vector<2x128xf32>
    %141 = arith.addf %140, %139 : vector<2x128xf32>
    %142 = arith.divf %140, %141 : vector<2x128xf32>
    %143 = arith.addf %127, %135 : vector<2x128xf32>
    %144 = arith.negf %143 : vector<2x128xf32>
    %145 = math.exp %144 : vector<2x128xf32>
    %cst_24 = arith.constant 1.000000e+00 : f32
    %146 = vector.broadcast %cst_24 : f32 to vector<2x128xf32>
    %147 = arith.addf %146, %145 : vector<2x128xf32>
    %148 = arith.divf %146, %147 : vector<2x128xf32>
    %149 = arith.mulf %142, %136 : vector<2x128xf32>
    %150 = arith.addf %130, %149 : vector<2x128xf32>
    %151 = math.tanh %150 : vector<2x128xf32>
    %cst_25 = arith.constant 1.000000e+00 : f32
    %152 = vector.broadcast %cst_25 : f32 to vector<2x128xf32>
    %153 = arith.subf %152, %148 : vector<2x128xf32>
    %154 = arith.mulf %153, %151 : vector<2x128xf32>
    %155 = arith.mulf %148, %119 : vector<2x128xf32>
    %156 = arith.addf %154, %155 : vector<2x128xf32>
    %157 = vector.extract_strided_slice %7 {offsets = [8, 0], sizes = [2, 384], strides = [1, 1]} : vector<16x384xf32> to vector<2x384xf32>
    %158 = vector.extract_strided_slice %7 {offsets = [6, 0], sizes = [2, 384], strides = [1, 1]} : vector<16x384xf32> to vector<2x384xf32>
    %159 = vector.extract_strided_slice %157 {offsets = [0, 0], sizes = [2, 64], strides = [1, 1]} : vector<2x384xf32> to vector<2x64xf32>
    %160 = vector.extract_strided_slice %158 {offsets = [0, 64], sizes = [2, 64], strides = [1, 1]} : vector<2x384xf32> to vector<2x64xf32>
    %161 = tpu.concatenate %159, %160 in 1 : vector<2x64xf32>, vector<2x64xf32> -> vector<2x128xf32>
    %162 = vector.extract_strided_slice %157 {offsets = [0, 128], sizes = [2, 64], strides = [1, 1]} : vector<2x384xf32> to vector<2x64xf32>
    %163 = vector.extract_strided_slice %158 {offsets = [0, 192], sizes = [2, 64], strides = [1, 1]} : vector<2x384xf32> to vector<2x64xf32>
    %164 = tpu.concatenate %162, %163 in 1 : vector<2x64xf32>, vector<2x64xf32> -> vector<2x128xf32>
    %165 = vector.extract_strided_slice %157 {offsets = [0, 256], sizes = [2, 64], strides = [1, 1]} : vector<2x384xf32> to vector<2x64xf32>
    %166 = vector.extract_strided_slice %158 {offsets = [0, 320], sizes = [2, 64], strides = [1, 1]} : vector<2x384xf32> to vector<2x64xf32>
    %167 = tpu.concatenate %165, %166 in 1 : vector<2x64xf32>, vector<2x64xf32> -> vector<2x128xf32>
    %cst_26 = arith.constant dense<0.000000e+00> : vector<2x384xf32>
    %168 = tpu.matmul %156, %2, %cst_26 {dimension_numbers = #tpu.dot_dimension_numbers<[1], [0], [0], [1], [0, 0, 1, 1], [], []>} : vector<2x128xf32>, vector<128x384xf32>, vector<2x384xf32> -> vector<2x384xf32>
    %169 = vector.broadcast %3 : vector<1x384xf32> to vector<2x384xf32>
    %170 = arith.addf %168, %169 : vector<2x384xf32>
    %171 = vector.extract_strided_slice %170 {offsets = [0, 0], sizes = [2, 128], strides = [1, 1]} : vector<2x384xf32> to vector<2x128xf32>
    %172 = vector.extract_strided_slice %170 {offsets = [0, 128], sizes = [2, 128], strides = [1, 1]} : vector<2x384xf32> to vector<2x128xf32>
    %173 = vector.extract_strided_slice %170 {offsets = [0, 256], sizes = [2, 128], strides = [1, 1]} : vector<2x384xf32> to vector<2x128xf32>
    %174 = arith.addf %161, %171 : vector<2x128xf32>
    %175 = arith.negf %174 : vector<2x128xf32>
    %176 = math.exp %175 : vector<2x128xf32>
    %cst_27 = arith.constant 1.000000e+00 : f32
    %177 = vector.broadcast %cst_27 : f32 to vector<2x128xf32>
    %178 = arith.addf %177, %176 : vector<2x128xf32>
    %179 = arith.divf %177, %178 : vector<2x128xf32>
    %180 = arith.addf %164, %172 : vector<2x128xf32>
    %181 = arith.negf %180 : vector<2x128xf32>
    %182 = math.exp %181 : vector<2x128xf32>
    %cst_28 = arith.constant 1.000000e+00 : f32
    %183 = vector.broadcast %cst_28 : f32 to vector<2x128xf32>
    %184 = arith.addf %183, %182 : vector<2x128xf32>
    %185 = arith.divf %183, %184 : vector<2x128xf32>
    %186 = arith.mulf %179, %173 : vector<2x128xf32>
    %187 = arith.addf %167, %186 : vector<2x128xf32>
    %188 = math.tanh %187 : vector<2x128xf32>
    %cst_29 = arith.constant 1.000000e+00 : f32
    %189 = vector.broadcast %cst_29 : f32 to vector<2x128xf32>
    %190 = arith.subf %189, %185 : vector<2x128xf32>
    %191 = arith.mulf %190, %188 : vector<2x128xf32>
    %192 = arith.mulf %185, %156 : vector<2x128xf32>
    %193 = arith.addf %191, %192 : vector<2x128xf32>
    %194 = vector.extract_strided_slice %7 {offsets = [10, 0], sizes = [2, 384], strides = [1, 1]} : vector<16x384xf32> to vector<2x384xf32>
    %195 = vector.extract_strided_slice %7 {offsets = [4, 0], sizes = [2, 384], strides = [1, 1]} : vector<16x384xf32> to vector<2x384xf32>
    %196 = vector.extract_strided_slice %194 {offsets = [0, 0], sizes = [2, 64], strides = [1, 1]} : vector<2x384xf32> to vector<2x64xf32>
    %197 = vector.extract_strided_slice %195 {offsets = [0, 64], sizes = [2, 64], strides = [1, 1]} : vector<2x384xf32> to vector<2x64xf32>
    %198 = tpu.concatenate %196, %197 in 1 : vector<2x64xf32>, vector<2x64xf32> -> vector<2x128xf32>
    %199 = vector.extract_strided_slice %194 {offsets = [0, 128], sizes = [2, 64], strides = [1, 1]} : vector<2x384xf32> to vector<2x64xf32>
    %200 = vector.extract_strided_slice %195 {offsets = [0, 192], sizes = [2, 64], strides = [1, 1]} : vector<2x384xf32> to vector<2x64xf32>
    %201 = tpu.concatenate %199, %200 in 1 : vector<2x64xf32>, vector<2x64xf32> -> vector<2x128xf32>
    %202 = vector.extract_strided_slice %194 {offsets = [0, 256], sizes = [2, 64], strides = [1, 1]} : vector<2x384xf32> to vector<2x64xf32>
    %203 = vector.extract_strided_slice %195 {offsets = [0, 320], sizes = [2, 64], strides = [1, 1]} : vector<2x384xf32> to vector<2x64xf32>
    %204 = tpu.concatenate %202, %203 in 1 : vector<2x64xf32>, vector<2x64xf32> -> vector<2x128xf32>
    %cst_30 = arith.constant dense<0.000000e+00> : vector<2x384xf32>
    %205 = tpu.matmul %193, %2, %cst_30 {dimension_numbers = #tpu.dot_dimension_numbers<[1], [0], [0], [1], [0, 0, 1, 1], [], []>} : vector<2x128xf32>, vector<128x384xf32>, vector<2x384xf32> -> vector<2x384xf32>
    %206 = vector.broadcast %3 : vector<1x384xf32> to vector<2x384xf32>
    %207 = arith.addf %205, %206 : vector<2x384xf32>
    %208 = vector.extract_strided_slice %207 {offsets = [0, 0], sizes = [2, 128], strides = [1, 1]} : vector<2x384xf32> to vector<2x128xf32>
    %209 = vector.extract_strided_slice %207 {offsets = [0, 128], sizes = [2, 128], strides = [1, 1]} : vector<2x384xf32> to vector<2x128xf32>
    %210 = vector.extract_strided_slice %207 {offsets = [0, 256], sizes = [2, 128], strides = [1, 1]} : vector<2x384xf32> to vector<2x128xf32>
    %211 = arith.addf %198, %208 : vector<2x128xf32>
    %212 = arith.negf %211 : vector<2x128xf32>
    %213 = math.exp %212 : vector<2x128xf32>
    %cst_31 = arith.constant 1.000000e+00 : f32
    %214 = vector.broadcast %cst_31 : f32 to vector<2x128xf32>
    %215 = arith.addf %214, %213 : vector<2x128xf32>
    %216 = arith.divf %214, %215 : vector<2x128xf32>
    %217 = arith.addf %201, %209 : vector<2x128xf32>
    %218 = arith.negf %217 : vector<2x128xf32>
    %219 = math.exp %218 : vector<2x128xf32>
    %cst_32 = arith.constant 1.000000e+00 : f32
    %220 = vector.broadcast %cst_32 : f32 to vector<2x128xf32>
    %221 = arith.addf %220, %219 : vector<2x128xf32>
    %222 = arith.divf %220, %221 : vector<2x128xf32>
    %223 = arith.mulf %216, %210 : vector<2x128xf32>
    %224 = arith.addf %204, %223 : vector<2x128xf32>
    %225 = math.tanh %224 : vector<2x128xf32>
    %cst_33 = arith.constant 1.000000e+00 : f32
    %226 = vector.broadcast %cst_33 : f32 to vector<2x128xf32>
    %227 = arith.subf %226, %222 : vector<2x128xf32>
    %228 = arith.mulf %227, %225 : vector<2x128xf32>
    %229 = arith.mulf %222, %193 : vector<2x128xf32>
    %230 = arith.addf %228, %229 : vector<2x128xf32>
    %231 = vector.extract_strided_slice %7 {offsets = [12, 0], sizes = [2, 384], strides = [1, 1]} : vector<16x384xf32> to vector<2x384xf32>
    %232 = vector.extract_strided_slice %7 {offsets = [2, 0], sizes = [2, 384], strides = [1, 1]} : vector<16x384xf32> to vector<2x384xf32>
    %233 = vector.extract_strided_slice %231 {offsets = [0, 0], sizes = [2, 64], strides = [1, 1]} : vector<2x384xf32> to vector<2x64xf32>
    %234 = vector.extract_strided_slice %232 {offsets = [0, 64], sizes = [2, 64], strides = [1, 1]} : vector<2x384xf32> to vector<2x64xf32>
    %235 = tpu.concatenate %233, %234 in 1 : vector<2x64xf32>, vector<2x64xf32> -> vector<2x128xf32>
    %236 = vector.extract_strided_slice %231 {offsets = [0, 128], sizes = [2, 64], strides = [1, 1]} : vector<2x384xf32> to vector<2x64xf32>
    %237 = vector.extract_strided_slice %232 {offsets = [0, 192], sizes = [2, 64], strides = [1, 1]} : vector<2x384xf32> to vector<2x64xf32>
    %238 = tpu.concatenate %236, %237 in 1 : vector<2x64xf32>, vector<2x64xf32> -> vector<2x128xf32>
    %239 = vector.extract_strided_slice %231 {offsets = [0, 256], sizes = [2, 64], strides = [1, 1]} : vector<2x384xf32> to vector<2x64xf32>
    %240 = vector.extract_strided_slice %232 {offsets = [0, 320], sizes = [2, 64], strides = [1, 1]} : vector<2x384xf32> to vector<2x64xf32>
    %241 = tpu.concatenate %239, %240 in 1 : vector<2x64xf32>, vector<2x64xf32> -> vector<2x128xf32>
    %cst_34 = arith.constant dense<0.000000e+00> : vector<2x384xf32>
    %242 = tpu.matmul %230, %2, %cst_34 {dimension_numbers = #tpu.dot_dimension_numbers<[1], [0], [0], [1], [0, 0, 1, 1], [], []>} : vector<2x128xf32>, vector<128x384xf32>, vector<2x384xf32> -> vector<2x384xf32>
    %243 = vector.broadcast %3 : vector<1x384xf32> to vector<2x384xf32>
    %244 = arith.addf %242, %243 : vector<2x384xf32>
    %245 = vector.extract_strided_slice %244 {offsets = [0, 0], sizes = [2, 128], strides = [1, 1]} : vector<2x384xf32> to vector<2x128xf32>
    %246 = vector.extract_strided_slice %244 {offsets = [0, 128], sizes = [2, 128], strides = [1, 1]} : vector<2x384xf32> to vector<2x128xf32>
    %247 = vector.extract_strided_slice %244 {offsets = [0, 256], sizes = [2, 128], strides = [1, 1]} : vector<2x384xf32> to vector<2x128xf32>
    %248 = arith.addf %235, %245 : vector<2x128xf32>
    %249 = arith.negf %248 : vector<2x128xf32>
    %250 = math.exp %249 : vector<2x128xf32>
    %cst_35 = arith.constant 1.000000e+00 : f32
    %251 = vector.broadcast %cst_35 : f32 to vector<2x128xf32>
    %252 = arith.addf %251, %250 : vector<2x128xf32>
    %253 = arith.divf %251, %252 : vector<2x128xf32>
    %254 = arith.addf %238, %246 : vector<2x128xf32>
    %255 = arith.negf %254 : vector<2x128xf32>
    %256 = math.exp %255 : vector<2x128xf32>
    %cst_36 = arith.constant 1.000000e+00 : f32
    %257 = vector.broadcast %cst_36 : f32 to vector<2x128xf32>
    %258 = arith.addf %257, %256 : vector<2x128xf32>
    %259 = arith.divf %257, %258 : vector<2x128xf32>
    %260 = arith.mulf %253, %247 : vector<2x128xf32>
    %261 = arith.addf %241, %260 : vector<2x128xf32>
    %262 = math.tanh %261 : vector<2x128xf32>
    %cst_37 = arith.constant 1.000000e+00 : f32
    %263 = vector.broadcast %cst_37 : f32 to vector<2x128xf32>
    %264 = arith.subf %263, %259 : vector<2x128xf32>
    %265 = arith.mulf %264, %262 : vector<2x128xf32>
    %266 = arith.mulf %259, %230 : vector<2x128xf32>
    %267 = arith.addf %265, %266 : vector<2x128xf32>
    %268 = vector.extract_strided_slice %7 {offsets = [14, 0], sizes = [2, 384], strides = [1, 1]} : vector<16x384xf32> to vector<2x384xf32>
    %269 = vector.extract_strided_slice %7 {offsets = [0, 0], sizes = [2, 384], strides = [1, 1]} : vector<16x384xf32> to vector<2x384xf32>
    %270 = vector.extract_strided_slice %268 {offsets = [0, 0], sizes = [2, 64], strides = [1, 1]} : vector<2x384xf32> to vector<2x64xf32>
    %271 = vector.extract_strided_slice %269 {offsets = [0, 64], sizes = [2, 64], strides = [1, 1]} : vector<2x384xf32> to vector<2x64xf32>
    %272 = tpu.concatenate %270, %271 in 1 : vector<2x64xf32>, vector<2x64xf32> -> vector<2x128xf32>
    %273 = vector.extract_strided_slice %268 {offsets = [0, 128], sizes = [2, 64], strides = [1, 1]} : vector<2x384xf32> to vector<2x64xf32>
    %274 = vector.extract_strided_slice %269 {offsets = [0, 192], sizes = [2, 64], strides = [1, 1]} : vector<2x384xf32> to vector<2x64xf32>
    %275 = tpu.concatenate %273, %274 in 1 : vector<2x64xf32>, vector<2x64xf32> -> vector<2x128xf32>
    %276 = vector.extract_strided_slice %268 {offsets = [0, 256], sizes = [2, 64], strides = [1, 1]} : vector<2x384xf32> to vector<2x64xf32>
    %277 = vector.extract_strided_slice %269 {offsets = [0, 320], sizes = [2, 64], strides = [1, 1]} : vector<2x384xf32> to vector<2x64xf32>
    %278 = tpu.concatenate %276, %277 in 1 : vector<2x64xf32>, vector<2x64xf32> -> vector<2x128xf32>
    %cst_38 = arith.constant dense<0.000000e+00> : vector<2x384xf32>
    %279 = tpu.matmul %267, %2, %cst_38 {dimension_numbers = #tpu.dot_dimension_numbers<[1], [0], [0], [1], [0, 0, 1, 1], [], []>} : vector<2x128xf32>, vector<128x384xf32>, vector<2x384xf32> -> vector<2x384xf32>
    %280 = vector.broadcast %3 : vector<1x384xf32> to vector<2x384xf32>
    %281 = arith.addf %279, %280 : vector<2x384xf32>
    %282 = vector.extract_strided_slice %281 {offsets = [0, 0], sizes = [2, 128], strides = [1, 1]} : vector<2x384xf32> to vector<2x128xf32>
    %283 = vector.extract_strided_slice %281 {offsets = [0, 128], sizes = [2, 128], strides = [1, 1]} : vector<2x384xf32> to vector<2x128xf32>
    %284 = vector.extract_strided_slice %281 {offsets = [0, 256], sizes = [2, 128], strides = [1, 1]} : vector<2x384xf32> to vector<2x128xf32>
    %285 = arith.addf %272, %282 : vector<2x128xf32>
    %286 = arith.negf %285 : vector<2x128xf32>
    %287 = math.exp %286 : vector<2x128xf32>
    %cst_39 = arith.constant 1.000000e+00 : f32
    %288 = vector.broadcast %cst_39 : f32 to vector<2x128xf32>
    %289 = arith.addf %288, %287 : vector<2x128xf32>
    %290 = arith.divf %288, %289 : vector<2x128xf32>
    %291 = arith.addf %275, %283 : vector<2x128xf32>
    %292 = arith.negf %291 : vector<2x128xf32>
    %293 = math.exp %292 : vector<2x128xf32>
    %cst_40 = arith.constant 1.000000e+00 : f32
    %294 = vector.broadcast %cst_40 : f32 to vector<2x128xf32>
    %295 = arith.addf %294, %293 : vector<2x128xf32>
    %296 = arith.divf %294, %295 : vector<2x128xf32>
    %297 = arith.mulf %290, %284 : vector<2x128xf32>
    %298 = arith.addf %278, %297 : vector<2x128xf32>
    %299 = math.tanh %298 : vector<2x128xf32>
    %cst_41 = arith.constant 1.000000e+00 : f32
    %300 = vector.broadcast %cst_41 : f32 to vector<2x128xf32>
    %301 = arith.subf %300, %296 : vector<2x128xf32>
    %302 = arith.mulf %301, %299 : vector<2x128xf32>
    %303 = arith.mulf %296, %267 : vector<2x128xf32>
    %304 = arith.addf %302, %303 : vector<2x128xf32>
    %305 = vector.extract_strided_slice %45 {offsets = [0, 0], sizes = [2, 64], strides = [1, 1]} : vector<2x128xf32> to vector<2x64xf32>
    %306 = vector.extract_strided_slice %304 {offsets = [0, 64], sizes = [2, 64], strides = [1, 1]} : vector<2x128xf32> to vector<2x64xf32>
    %307 = tpu.concatenate %305, %306 in 1 : vector<2x64xf32>, vector<2x64xf32> -> vector<2x128xf32>
    %308 = vector.extract_strided_slice %82 {offsets = [0, 0], sizes = [2, 64], strides = [1, 1]} : vector<2x128xf32> to vector<2x64xf32>
    %309 = vector.extract_strided_slice %267 {offsets = [0, 64], sizes = [2, 64], strides = [1, 1]} : vector<2x128xf32> to vector<2x64xf32>
    %310 = tpu.concatenate %308, %309 in 1 : vector<2x64xf32>, vector<2x64xf32> -> vector<2x128xf32>
    %311 = vector.extract_strided_slice %119 {offsets = [0, 0], sizes = [2, 64], strides = [1, 1]} : vector<2x128xf32> to vector<2x64xf32>
    %312 = vector.extract_strided_slice %230 {offsets = [0, 64], sizes = [2, 64], strides = [1, 1]} : vector<2x128xf32> to vector<2x64xf32>
    %313 = tpu.concatenate %311, %312 in 1 : vector<2x64xf32>, vector<2x64xf32> -> vector<2x128xf32>
    %314 = vector.extract_strided_slice %156 {offsets = [0, 0], sizes = [2, 64], strides = [1, 1]} : vector<2x128xf32> to vector<2x64xf32>
    %315 = vector.extract_strided_slice %193 {offsets = [0, 64], sizes = [2, 64], strides = [1, 1]} : vector<2x128xf32> to vector<2x64xf32>
    %316 = tpu.concatenate %314, %315 in 1 : vector<2x64xf32>, vector<2x64xf32> -> vector<2x128xf32>
    %317 = vector.extract_strided_slice %193 {offsets = [0, 0], sizes = [2, 64], strides = [1, 1]} : vector<2x128xf32> to vector<2x64xf32>
    %318 = vector.extract_strided_slice %156 {offsets = [0, 64], sizes = [2, 64], strides = [1, 1]} : vector<2x128xf32> to vector<2x64xf32>
    %319 = tpu.concatenate %317, %318 in 1 : vector<2x64xf32>, vector<2x64xf32> -> vector<2x128xf32>
    %320 = vector.extract_strided_slice %230 {offsets = [0, 0], sizes = [2, 64], strides = [1, 1]} : vector<2x128xf32> to vector<2x64xf32>
    %321 = vector.extract_strided_slice %119 {offsets = [0, 64], sizes = [2, 64], strides = [1, 1]} : vector<2x128xf32> to vector<2x64xf32>
    %322 = tpu.concatenate %320, %321 in 1 : vector<2x64xf32>, vector<2x64xf32> -> vector<2x128xf32>
    %323 = vector.extract_strided_slice %267 {offsets = [0, 0], sizes = [2, 64], strides = [1, 1]} : vector<2x128xf32> to vector<2x64xf32>
    %324 = vector.extract_strided_slice %82 {offsets = [0, 64], sizes = [2, 64], strides = [1, 1]} : vector<2x128xf32> to vector<2x64xf32>
    %325 = tpu.concatenate %323, %324 in 1 : vector<2x64xf32>, vector<2x64xf32> -> vector<2x128xf32>
    %326 = vector.extract_strided_slice %304 {offsets = [0, 0], sizes = [2, 64], strides = [1, 1]} : vector<2x128xf32> to vector<2x64xf32>
    %327 = vector.extract_strided_slice %45 {offsets = [0, 64], sizes = [2, 64], strides = [1, 1]} : vector<2x128xf32> to vector<2x64xf32>
    %328 = tpu.concatenate %326, %327 in 1 : vector<2x64xf32>, vector<2x64xf32> -> vector<2x128xf32>
    %329 = tpu.concatenate %307, %310, %313, %316, %319, %322, %325, %328 in 0 : vector<2x128xf32>, vector<2x128xf32>, vector<2x128xf32>, vector<2x128xf32>, vector<2x128xf32>, vector<2x128xf32>, vector<2x128xf32>, vector<2x128xf32> -> vector<16x128xf32>
    %c0_42 = arith.constant 0 : index
    %c0_43 = arith.constant 0 : index
    %330 = vector.load %arg5[%c0_42, %c0_43] : memref<128x128xf32, #tpu.memory_space<vmem>>, vector<128x128xf32>
    %c0_44 = arith.constant 0 : index
    %c0_45 = arith.constant 0 : index
    %331 = vector.load %arg6[%c0_44, %c0_45] : memref<1x128xf32, #tpu.memory_space<vmem>>, vector<1x128xf32>
    %c0_46 = arith.constant 0 : index
    %c0_47 = arith.constant 0 : index
    %332 = vector.load %arg7[%c0_46, %c0_47] : memref<1x128xf32, #tpu.memory_space<vmem>>, vector<1x128xf32>
    %cst_48 = arith.constant dense<0.000000e+00> : vector<16x128xf32>
    %333 = tpu.matmul %329, %330, %cst_48 {dimension_numbers = #tpu.dot_dimension_numbers<[1], [0], [0], [1], [0, 0, 1, 1], [], []>} : vector<16x128xf32>, vector<128x128xf32>, vector<16x128xf32> -> vector<16x128xf32>
    %334 = vector.broadcast %331 : vector<1x128xf32> to vector<16x128xf32>
    %335 = arith.addf %333, %334 : vector<16x128xf32>
    %336 = math.tanh %335 : vector<16x128xf32>
    %337 = vector.broadcast %332 : vector<1x128xf32> to vector<16x128xf32>
    %338 = arith.mulf %336, %337 : vector<16x128xf32>
    %cst_49 = arith.constant dense<0.000000e+00> : vector<16xf32>
    %339 = vector.multi_reduction <add>, %338, %cst_49 [1] : vector<16x128xf32> to vector<16xf32>
    %340 = vector.shape_cast %339 : vector<16xf32> to vector<16x1xf32>
    %341 = math.tanh %340 : vector<16x1xf32>
    %342 = vector.extract_strided_slice %341 {offsets = [0, 0], sizes = [2, 1], strides = [1, 1]} : vector<16x1xf32> to vector<2x1xf32>
    %343 = vector.extract_strided_slice %341 {offsets = [2, 0], sizes = [2, 1], strides = [1, 1]} : vector<16x1xf32> to vector<2x1xf32>
    %344 = vector.extract_strided_slice %341 {offsets = [4, 0], sizes = [2, 1], strides = [1, 1]} : vector<16x1xf32> to vector<2x1xf32>
    %345 = vector.extract_strided_slice %341 {offsets = [6, 0], sizes = [2, 1], strides = [1, 1]} : vector<16x1xf32> to vector<2x1xf32>
    %346 = vector.extract_strided_slice %341 {offsets = [8, 0], sizes = [2, 1], strides = [1, 1]} : vector<16x1xf32> to vector<2x1xf32>
    %347 = vector.extract_strided_slice %341 {offsets = [10, 0], sizes = [2, 1], strides = [1, 1]} : vector<16x1xf32> to vector<2x1xf32>
    %348 = vector.extract_strided_slice %341 {offsets = [12, 0], sizes = [2, 1], strides = [1, 1]} : vector<16x1xf32> to vector<2x1xf32>
    %349 = vector.extract_strided_slice %341 {offsets = [14, 0], sizes = [2, 1], strides = [1, 1]} : vector<16x1xf32> to vector<2x1xf32>
    %350 = tpu.concatenate %342, %343, %344, %345, %346, %347, %348, %349 in 1 : vector<2x1xf32>, vector<2x1xf32>, vector<2x1xf32>, vector<2x1xf32>, vector<2x1xf32>, vector<2x1xf32>, vector<2x1xf32>, vector<2x1xf32> -> vector<2x8xf32>
    %cst_50 = arith.constant dense<0xFF800000> : vector<2xf32>
    %351 = vector.multi_reduction <maximumf>, %350, %cst_50 [1] : vector<2x8xf32> to vector<2xf32>
    %352 = vector.shape_cast %351 : vector<2xf32> to vector<2x1xf32>
    %353 = vector.broadcast %352 : vector<2x1xf32> to vector<2x8xf32>
    %354 = arith.subf %350, %353 : vector<2x8xf32>
    %355 = math.exp %354 : vector<2x8xf32>
    %cst_51 = arith.constant dense<0.000000e+00> : vector<2xf32>
    %356 = vector.multi_reduction <add>, %355, %cst_51 [1] : vector<2x8xf32> to vector<2xf32>
    %357 = vector.shape_cast %356 : vector<2xf32> to vector<2x1xf32>
    %358 = vector.broadcast %357 : vector<2x1xf32> to vector<2x8xf32>
    %359 = arith.divf %355, %358 : vector<2x8xf32>
    %360 = vector.extract_strided_slice %359 {offsets = [0, 0], sizes = [2, 1], strides = [1, 1]} : vector<2x8xf32> to vector<2x1xf32>
    %361 = vector.broadcast %360 : vector<2x1xf32> to vector<2x128xf32>
    %362 = arith.mulf %361, %307 : vector<2x128xf32>
    %363 = vector.extract_strided_slice %359 {offsets = [0, 1], sizes = [2, 1], strides = [1, 1]} : vector<2x8xf32> to vector<2x1xf32>
    %364 = vector.broadcast %363 : vector<2x1xf32> to vector<2x128xf32>
    %365 = arith.mulf %364, %310 : vector<2x128xf32>
    %366 = arith.addf %362, %365 : vector<2x128xf32>
    %367 = vector.extract_strided_slice %359 {offsets = [0, 2], sizes = [2, 1], strides = [1, 1]} : vector<2x8xf32> to vector<2x1xf32>
    %368 = vector.broadcast %367 : vector<2x1xf32> to vector<2x128xf32>
    %369 = arith.mulf %368, %313 : vector<2x128xf32>
    %370 = arith.addf %366, %369 : vector<2x128xf32>
    %371 = vector.extract_strided_slice %359 {offsets = [0, 3], sizes = [2, 1], strides = [1, 1]} : vector<2x8xf32> to vector<2x1xf32>
    %372 = vector.broadcast %371 : vector<2x1xf32> to vector<2x128xf32>
    %373 = arith.mulf %372, %316 : vector<2x128xf32>
    %374 = arith.addf %370, %373 : vector<2x128xf32>
    %375 = vector.extract_strided_slice %359 {offsets = [0, 4], sizes = [2, 1], strides = [1, 1]} : vector<2x8xf32> to vector<2x1xf32>
    %376 = vector.broadcast %375 : vector<2x1xf32> to vector<2x128xf32>
    %377 = arith.mulf %376, %319 : vector<2x128xf32>
    %378 = arith.addf %374, %377 : vector<2x128xf32>
    %379 = vector.extract_strided_slice %359 {offsets = [0, 5], sizes = [2, 1], strides = [1, 1]} : vector<2x8xf32> to vector<2x1xf32>
    %380 = vector.broadcast %379 : vector<2x1xf32> to vector<2x128xf32>
    %381 = arith.mulf %380, %322 : vector<2x128xf32>
    %382 = arith.addf %378, %381 : vector<2x128xf32>
    %383 = vector.extract_strided_slice %359 {offsets = [0, 6], sizes = [2, 1], strides = [1, 1]} : vector<2x8xf32> to vector<2x1xf32>
    %384 = vector.broadcast %383 : vector<2x1xf32> to vector<2x128xf32>
    %385 = arith.mulf %384, %325 : vector<2x128xf32>
    %386 = arith.addf %382, %385 : vector<2x128xf32>
    %387 = vector.extract_strided_slice %359 {offsets = [0, 7], sizes = [2, 1], strides = [1, 1]} : vector<2x8xf32> to vector<2x1xf32>
    %388 = vector.broadcast %387 : vector<2x1xf32> to vector<2x128xf32>
    %389 = arith.mulf %388, %328 : vector<2x128xf32>
    %390 = arith.addf %386, %389 : vector<2x128xf32>
    %c0_52 = arith.constant 0 : index
    %c0_53 = arith.constant 0 : index
    %391 = vector.load %arg8[%c0_52, %c0_53] : memref<2x128xf32, #tpu.memory_space<vmem>>, vector<2x128xf32>
    tpu.vector_store %arg8[%c0_52, %c0_53], %390 {strides = array<i32>} : memref<2x128xf32, #tpu.memory_space<vmem>>, vector<2x128xf32>,
    return
  }
}

</mosaic_0001>

<llo_original>
// kernel: sent_att_forward.1
$region0: #{sent_att_forward.1}
  #allocation0 [shape = 'u32[]', space=smem, size = 0x4, offset = 0x4, fixed_abs, tag = 'smem constant byte address 0x4 - core index']
  #allocation1 [shape = 'u32[144,128]{1,0:T(1,128)}', space=vmem, size = 0x12000, scoped, tag = 'internal scratch']
  %s0 = inlined_call_operand.hbm [shape: f32[16,128], index: 0, kind: input, shape index: {}]
  %s1 = inlined_call_operand.hbm [shape: f32[128,384], index: 1, kind: input, shape index: {}]
  %s2 = inlined_call_operand.vmem [shape: f32[1,384], index: 2, kind: input, shape index: {}]
  %s3 = inlined_call_operand.hbm [shape: f32[128,384], index: 3, kind: input, shape index: {}]
  %s4 = inlined_call_operand.vmem [shape: f32[1,384], index: 4, kind: input, shape index: {}]
  %s5 = inlined_call_operand.hbm [shape: f32[128,128], index: 5, kind: input, shape index: {}]
  %s6 = inlined_call_operand.vmem [shape: f32[1,128], index: 6, kind: input, shape index: {}]
  %s7 = inlined_call_operand.vmem [shape: f32[1,128], index: 7, kind: input, shape index: {}]
  %s8 = inlined_call_operand.hbm [shape: f32[2,128], index: 8, kind: output, shape index: {}]
  %s9 = sld [smem:[#allocation0]]
  $region58: #{sent_att_forward.1} parent=0
    _
  %s11 = ssub.s32 1, %s9
  %s12 = scalar_select 0, %s11, %s9
  $region1: #{sent_att_forward.1} parent=0
    #allocation2 [shape = 'u8[8192]{0}', space=vmem, size = 0x2000, scoped, tag = 'input window, operand 0, single buffered']
    #allocation3 [shape = 's32[1]{0}', space=sflag, size = 0x4, scoped, tag = 'scoped memory for sent_att_forward.1']
    #allocation4 [shape = 's32[1]{0}', space=sflag, size = 0x4, scoped, tag = 'scoped memory for sent_att_forward.1']
    #allocation5 [shape = 'u8[196608]{0}', space=vmem, size = 0x30000, scoped, tag = 'input window, operand 1, single buffered']
    #allocation6 [shape = 's32[1]{0}', space=sflag, size = 0x4, scoped, tag = 'scoped memory for sent_att_forward.1']
    #allocation7 [shape = 'u8[196608]{0}', space=vmem, size = 0x30000, scoped, tag = 'input window, operand 3, single buffered']
    #allocation8 [shape = 'u8[65536]{0}', space=vmem, size = 0x10000, scoped, tag = 'input window, operand 5, single buffered']
    #allocation9 [shape = 's32[1]{0}', space=sflag, size = 0x4, scoped, tag = 'scoped memory for sent_att_forward.1']
    #allocation10 [shape = 'u8[1024]{0}', space=vmem, size = 0x400, scoped, tag = 'output window, operand 0, single buffered']
    %13 = vsyncpa [#allocation3], 0
    %14 = vsyncpa [#allocation6], 0
    %15 = vsyncpa [#allocation9], 0
    %16 = vsyncpa [#allocation4], 0
    // Predicated region
    $region2: #{sent_att_forward.1} parent=1 // pred_check
      _
    $region3: #{sent_att_forward.1} parent=1 // pred_check_branch
      %18 = sbr.rel (0) target = $region5
    $region4: #{sent_att_forward.1} parent=1 // pred_region
      %s20 = ssub.s32 256, 256
      %21 = vsyncadd [#allocation3], %s20
      %s22 = sshll.u32 [#allocation2], 4
      %s23 = int_to_ptr.vmem [resolvable:$true] %s22
      %28 = dma.hbm_to_vmem [thread:$0]  %s0, 256, %s23, [#allocation3], 128, 128, 8
    $region5: #{sent_att_forward.1} parent=1 // pred_fallthru
      _
    // Predicated region
    $region6: #{sent_att_forward.1} parent=1 // pred_check
      _
    $region7: #{sent_att_forward.1} parent=1 // pred_check_branch
      %30 = sbr.rel (0) target = $region9
    $region8: #{sent_att_forward.1} parent=1 // pred_region
      %s32 = ssub.s32 6144, 6144
      %33 = vsyncadd [#allocation6], %s32
      %s34 = sshll.u32 [#allocation5], 4
      %s35 = int_to_ptr.vmem [resolvable:$true] %s34
      %40 = dma.hbm_to_vmem [thread:$0]  %s1, 6144, %s35, [#allocation6], 384, 384, 24
    $region9: #{sent_att_forward.1} parent=1 // pred_fallthru
      _
    // Predicated region
    $region10: #{sent_att_forward.1} parent=1 // pred_check
      _
    $region11: #{sent_att_forward.1} parent=1 // pred_check_branch
      %42 = sbr.rel (0) target = $region13
    $region12: #{sent_att_forward.1} parent=1 // pred_region
      _
    $region13: #{sent_att_forward.1} parent=1 // pred_fallthru
      _
    // Predicated region
    $region14: #{sent_att_forward.1} parent=1 // pred_check
      _
    $region15: #{sent_att_forward.1} parent=1 // pred_check_branch
      %44 = sbr.rel (0) target = $region17
    $region16: #{sent_att_forward.1} parent=1 // pred_region
      %s46 = ssub.s32 6144, 6144
      %47 = vsyncadd [#allocation6], %s46
      %s48 = sshll.u32 [#allocation7], 4
      %s49 = int_to_ptr.vmem [resolvable:$true] %s48
      %54 = dma.hbm_to_vmem [thread:$0]  %s3, 6144, %s49, [#allocation6], 384, 384, 24
    $region17: #{sent_att_forward.1} parent=1 // pred_fallthru
      _
    // Predicated region
    $region18: #{sent_att_forward.1} parent=1 // pred_check
      _
    $region19: #{sent_att_forward.1} parent=1 // pred_check_branch
      %56 = sbr.rel (0) target = $region21
    $region20: #{sent_att_forward.1} parent=1 // pred_region
      _
    $region21: #{sent_att_forward.1} parent=1 // pred_fallthru
      _
    // Predicated region
    $region22: #{sent_att_forward.1} parent=1 // pred_check
      _
    $region23: #{sent_att_forward.1} parent=1 // pred_check_branch
      %58 = sbr.rel (0) target = $region25
    $region24: #{sent_att_forward.1} parent=1 // pred_region
      %s60 = ssub.s32 2048, 2048
      %61 = vsyncadd [#allocation9], %s60
      %s62 = sshll.u32 [#allocation8], 4
      %s63 = int_to_ptr.vmem [resolvable:$true] %s62
      %68 = dma.hbm_to_vmem [thread:$0]  %s5, 2048, %s63, [#allocation9], 128, 128, 8
    $region25: #{sent_att_forward.1} parent=1 // pred_fallthru
      _
    // Predicated region
    $region26: #{sent_att_forward.1} parent=1 // pred_check
      _
    $region27: #{sent_att_forward.1} parent=1 // pred_check_branch
      %70 = sbr.rel (0) target = $region29
    $region28: #{sent_att_forward.1} parent=1 // pred_region
      _
    $region29: #{sent_att_forward.1} parent=1 // pred_fallthru
      _
    // Predicated region
    $region30: #{sent_att_forward.1} parent=1 // pred_check
      _
    $region31: #{sent_att_forward.1} parent=1 // pred_check_branch
      %72 = sbr.rel (0) target = $region33
    $region32: #{sent_att_forward.1} parent=1 // pred_region
      _
    $region33: #{sent_att_forward.1} parent=1 // pred_fallthru
      _
    // Predicated region
    $region34: #{sent_att_forward.1} parent=1 // pred_check
      _
    $region35: #{sent_att_forward.1} parent=1 // pred_check_branch
      %74 = sbr.rel (0) target = $region37
    $region36: #{sent_att_forward.1} parent=1 // pred_region
      %75 = dma.done [#allocation3], 256
    $region37: #{sent_att_forward.1} parent=1 // pred_fallthru
      _
    // Predicated region
    $region38: #{sent_att_forward.1} parent=1 // pred_check
      _
    $region39: #{sent_att_forward.1} parent=1 // pred_check_branch
      %77 = sbr.rel (0) target = $region41
    $region40: #{sent_att_forward.1} parent=1 // pred_region
      %78 = dma.done [#allocation6], 6144
    $region41: #{sent_att_forward.1} parent=1 // pred_fallthru
      _
    // Predicated region
    $region42: #{sent_att_forward.1} parent=1 // pred_check
      _
    $region43: #{sent_att_forward.1} parent=1 // pred_check_branch
      %80 = sbr.rel (0) target = $region45
    $region44: #{sent_att_forward.1} parent=1 // pred_region
      %81 = dma.done [#allocation6], 6144
    $region45: #{sent_att_forward.1} parent=1 // pred_fallthru
      _
    // Predicated region
    $region46: #{sent_att_forward.1} parent=1 // pred_check
      _
    $region47: #{sent_att_forward.1} parent=1 // pred_check_branch
      %83 = sbr.rel (0) target = $region49
    $region48: #{sent_att_forward.1} parent=1 // pred_region
      %84 = dma.done [#allocation9], 2048
    $region49: #{sent_att_forward.1} parent=1 // pred_fallthru
      _
    %v85 = vld [vmem:[#allocation5] sm:$0xff]
    %v86 = vld [vmem:[#allocation5 + $0x8] sm:$0xff]
    %v87 = vld [vmem:[#allocation5 + $0x10] sm:$0xff]
    %v88 = vld [vmem:[#allocation5 + $0x18] sm:$0xff]
    %v89 = vld [vmem:[#allocation5 + $0x20] sm:$0xff]
    %v90 = vld [vmem:[#allocation5 + $0x28] sm:$0xff]
    %v91 = vld [vmem:[#allocation5 + $0x30] sm:$0xff]
    %v92 = vld [vmem:[#allocation5 + $0x38] sm:$0xff]
    %v93 = vld [vmem:[#allocation5 + $0x40] sm:$0xff]
    %v94 = vld [vmem:[#allocation5 + $0x48] sm:$0xff]
    %v95 = vld [vmem:[#allocation5 + $0x50] sm:$0xff]
    %v96 = vld [vmem:[#allocation5 + $0x58] sm:$0xff]
    %v97 = vld [vmem:[#allocation5 + $0x60] sm:$0xff]
    %v98 = vld [vmem:[#allocation5 + $0x68] sm:$0xff]
    %v99 = vld [vmem:[#allocation5 + $0x70] sm:$0xff]
    %v100 = vld [vmem:[#allocation5 + $0x78] sm:$0xff]
    %v101 = vld [vmem:[#allocation5 + $0x80] sm:$0xff]
    %v102 = vld [vmem:[#allocation5 + $0x88] sm:$0xff]
    %v103 = vld [vmem:[#allocation5 + $0x90] sm:$0xff]
    %v104 = vld [vmem:[#allocation5 + $0x98] sm:$0xff]
    %v105 = vld [vmem:[#allocation5 + $0xa0] sm:$0xff]
    %v106 = vld [vmem:[#allocation5 + $0xa8] sm:$0xff]
    %v107 = vld [vmem:[#allocation5 + $0xb0] sm:$0xff]
    %v108 = vld [vmem:[#allocation5 + $0xb8] sm:$0xff]
    %v109 = vld [vmem:[#allocation5 + $0xc0] sm:$0xff]
    %v110 = vld [vmem:[#allocation5 + $0xc8] sm:$0xff]
    %v111 = vld [vmem:[#allocation5 + $0xd0] sm:$0xff]
    %v112 = vld [vmem:[#allocation5 + $0xd8] sm:$0xff]
    %v113 = vld [vmem:[#allocation5 + $0xe0] sm:$0xff]
    %v114 = vld [vmem:[#allocation5 + $0xe8] sm:$0xff]
    %v115 = vld [vmem:[#allocation5 + $0xf0] sm:$0xff]
    %v116 = vld [vmem:[#allocation5 + $0xf8] sm:$0xff]
    %v117 = vld [vmem:[#allocation5 + $0x100] sm:$0xff]
    %v118 = vld [vmem:[#allocation5 + $0x108] sm:$0xff]
    %v119 = vld [vmem:[#allocation5 + $0x110] sm:$0xff]
    %v120 = vld [vmem:[#allocation5 + $0x118] sm:$0xff]
    %v121 = vld [vmem:[#allocation5 + $0x120] sm:$0xff]
    %v122 = vld [vmem:[#allocation5 + $0x128] sm:$0xff]
    %v123 = vld [vmem:[#allocation5 + $0x130] sm:$0xff]
    %v124 = vld [vmem:[#allocation5 + $0x138] sm:$0xff]
    %v125 = vld [vmem:[#allocation5 + $0x140] sm:$0xff]
    %v126 = vld [vmem:[#allocation5 + $0x148] sm:$0xff]
    %v127 = vld [vmem:[#allocation5 + $0x150] sm:$0xff]
    %v128 = vld [vmem:[#allocation5 + $0x158] sm:$0xff]
    %v129 = vld [vmem:[#allocation5 + $0x160] sm:$0xff]
    %v130 = vld [vmem:[#allocation5 + $0x168] sm:$0xff]
    %v131 = vld [vmem:[#allocation5 + $0x170] sm:$0xff]
    %v132 = vld [vmem:[#allocation5 + $0x178] sm:$0xff]
    %v133 = vld [vmem:[%s2] sm:$0x7]
    %v134 = vld [vmem:[#allocation7] sm:$0xff]
    %v135 = vld [vmem:[#allocation7 + $0x8] sm:$0xff]
    %v136 = vld [vmem:[#allocation7 + $0x10] sm:$0xff]
    %v137 = vld [vmem:[#allocation7 + $0x18] sm:$0xff]
    %v138 = vld [vmem:[#allocation7 + $0x20] sm:$0xff]
    %v139 = vld [vmem:[#allocation7 + $0x28] sm:$0xff]
    %v140 = vld [vmem:[#allocation7 + $0x30] sm:$0xff]
    %v141 = vld [vmem:[#allocation7 + $0x38] sm:$0xff]
    %v142 = vld [vmem:[#allocation7 + $0x40] sm:$0xff]
    %v143 = vld [vmem:[#allocation7 + $0x48] sm:$0xff]
    %v144 = vld [vmem:[#allocation7 + $0x50] sm:$0xff]
    %v145 = vld [vmem:[#allocation7 + $0x58] sm:$0xff]
    %v146 = vld [vmem:[#allocation7 + $0x60] sm:$0xff]
    %v147 = vld [vmem:[#allocation7 + $0x68] sm:$0xff]
    %v148 = vld [vmem:[#allocation7 + $0x70] sm:$0xff]
    %v149 = vld [vmem:[#allocation7 + $0x78] sm:$0xff]
    %v150 = vld [vmem:[#allocation7 + $0x80] sm:$0xff]
    %v151 = vld [vmem:[#allocation7 + $0x88] sm:$0xff]
    %v152 = vld [vmem:[#allocation7 + $0x90] sm:$0xff]
    %v153 = vld [vmem:[#allocation7 + $0x98] sm:$0xff]
    %v154 = vld [vmem:[#allocation7 + $0xa0] sm:$0xff]
    %v155 = vld [vmem:[#allocation7 + $0xa8] sm:$0xff]
    %v156 = vld [vmem:[#allocation7 + $0xb0] sm:$0xff]
    %v157 = vld [vmem:[#allocation7 + $0xb8] sm:$0xff]
    %v158 = vld [vmem:[#allocation7 + $0xc0] sm:$0xff]
    %v159 = vld [vmem:[#allocation7 + $0xc8] sm:$0xff]
    %v160 = vld [vmem:[#allocation7 + $0xd0] sm:$0xff]
    %v161 = vld [vmem:[#allocation7 + $0xd8] sm:$0xff]
    %v162 = vld [vmem:[#allocation7 + $0xe0] sm:$0xff]
    %v163 = vld [vmem:[#allocation7 + $0xe8] sm:$0xff]
    %v164 = vld [vmem:[#allocation7 + $0xf0] sm:$0xff]
    %v165 = vld [vmem:[#allocation7 + $0xf8] sm:$0xff]
    %v166 = vld [vmem:[#allocation7 + $0x100] sm:$0xff]
    %v167 = vld [vmem:[#allocation7 + $0x108] sm:$0xff]
    %v168 = vld [vmem:[#allocation7 + $0x110] sm:$0xff]
    %v169 = vld [vmem:[#allocation7 + $0x118] sm:$0xff]
    %v170 = vld [vmem:[#allocation7 + $0x120] sm:$0xff]
    %v171 = vld [vmem:[#allocation7 + $0x128] sm:$0xff]
    %v172 = vld [vmem:[#allocation7 + $0x130] sm:$0xff]
    %v173 = vld [vmem:[#allocation7 + $0x138] sm:$0xff]
    %v174 = vld [vmem:[#allocation7 + $0x140] sm:$0xff]
    %v175 = vld [vmem:[#allocation7 + $0x148] sm:$0xff]
    %v176 = vld [vmem:[#allocation7 + $0x150] sm:$0xff]
    %v177 = vld [vmem:[#allocation7 + $0x158] sm:$0xff]
    %v178 = vld [vmem:[#allocation7 + $0x160] sm:$0xff]
    %v179 = vld [vmem:[#allocation7 + $0x168] sm:$0xff]
    %v180 = vld [vmem:[#allocation7 + $0x170] sm:$0xff]
    %v181 = vld [vmem:[#allocation7 + $0x178] sm:$0xff]
    %v182 = vld [vmem:[%s4] sm:$0x7]
    %v183 = vld [vmem:[#allocation2] sm:$0xff]
    %v184 = vld [vmem:[#allocation2 + $0x8] sm:$0xff]
    %v186 = vlaneseq
    %v187 = vshrl.u32 %v186, 7
    %v188 = vsub.s32 0, %v187
    %v189 = vrot.slane %v133, %v188
    %v190 = vlaneseq
    %v191 = vshrl.u32 %v190, 7
    %v192 = vsub.s32 1, %v191
    %v193 = vrot.slane %v133, %v192
    %v194 = vlaneseq
    %v195 = vshrl.u32 %v194, 7
    %v196 = vsub.s32 2, %v195
    %v197 = vrot.slane %v133, %v196
    %201 = vmatprep.subr.mxu0 %v86
    %202 = vmatpush1.msra.mxu0 %v85
    %203 = vmatprep.subr.mxu0 %v89
    %204 = vmatpush1.msra.mxu0 %v88
    %205 = vmatprep.subr.mxu0 %v92
    %206 = vmatpush1.msra.mxu0 %v91
    %207 = vmatprep.subr.mxu0 %v95
    %208 = vmatpush1.msra.mxu0 %v94
    %209 = vmatprep.subr.mxu0 %v98
    %210 = vmatpush1.msra.mxu0 %v97
    %211 = vmatprep.subr.mxu0 %v101
    %212 = vmatpush1.msra.mxu0 %v100
    %213 = vmatprep.subr.mxu0 %v104
    %214 = vmatpush1.msra.mxu0 %v103
    %215 = vmatprep.subr.mxu0 %v107
    %216 = vmatpush1.msra.mxu0 %v106
    %217 = vmatprep.subr.mxu0 %v110
    %218 = vmatpush1.msra.mxu0 %v109
    %219 = vmatprep.subr.mxu0 %v113
    %220 = vmatpush1.msra.mxu0 %v112
    %221 = vmatprep.subr.mxu0 %v116
    %222 = vmatpush1.msra.mxu0 %v115
    %223 = vmatprep.subr.mxu0 %v119
    %224 = vmatpush1.msra.mxu0 %v118
    %225 = vmatprep.subr.mxu0 %v122
    %226 = vmatpush1.msra.mxu0 %v121
    %227 = vmatprep.subr.mxu0 %v125
    %228 = vmatpush1.msra.mxu0 %v124
    %229 = vmatprep.subr.mxu0 %v128
    %230 = vmatpush1.msra.mxu0 %v127
    %231 = vmatprep.subr.mxu0 %v131
    %232 = vmatpush1.msra.mxu0 %v130
    %233 = vmatprep.subr.mxu0 0.0
    %234 = vmatpush1.msra.mxu0 0.0
    %235 = vmatprep.subr.mxu0 0.0
    %236 = vmatpush1.msra.mxu0 0.0
    %237 = vmatprep.subr.mxu0 0.0
    %238 = vmatpush1.msra.mxu0 0.0
    %239 = vmatprep.subr.mxu0 0.0
    %240 = vmatpush1.msra.mxu0 0.0
    %241 = vmatprep.subr.mxu0 0.0
    %242 = vmatpush1.msra.mxu0 0.0
    %243 = vmatprep.subr.mxu0 0.0
    %244 = vmatpush1.msra.mxu0 0.0
    %245 = vmatprep.subr.mxu0 0.0
    %246 = vmatpush1.msra.mxu0 0.0
    %247 = vmatprep.subr.mxu0 0.0
    %248 = vmatpush1.msra.mxu0 0.0
    %249 = vmatprep.subr.mxu0 0.0
    %250 = vmatpush1.msra.mxu0 0.0
    %251 = vmatprep.subr.mxu0 0.0
    %252 = vmatpush1.msra.mxu0 0.0
    %253 = vmatprep.subr.mxu0 0.0
    %254 = vmatpush1.msra.mxu0 0.0
    %255 = vmatprep.subr.mxu0 0.0
    %256 = vmatpush1.msra.mxu0 0.0
    %257 = vmatprep.subr.mxu0 0.0
    %258 = vmatpush1.msra.mxu0 0.0
    %259 = vmatprep.subr.mxu0 0.0
    %260 = vmatpush1.msra.mxu0 0.0
    %261 = vmatprep.subr.mxu0 0.0
    %262 = vmatpush1.msra.mxu0 0.0
    %263 = vmatprep.subr.mxu0 0.0
    %264 = vmatpush1.msra.mxu0 0.0
    %265 = vmatprep.mubr.f32.mxu0 0.0
    %266 = vmatmul.mubr.f32.gmra.mrb[0].mxu0 %v183
    %v267 = vpop.f32.mrb[0].mxu0
    %v268 = vadd.f32 %v189, %v267
    %v269 = vpop.f32.mrb[0].mxu0
    %v270 = vadd.f32 %v193, %v269
    %271 = vmatprep.mubr.f32.mxu0 0.0
    %272 = vmatmul.mubr.f32.gmra.mrb[0].mxu0 %v184
    %v273 = vpop.f32.mrb[0].mxu0
    %v274 = vadd.f32 %v189, %v273
    %v275 = vpop.f32.mrb[0].mxu0
    %v276 = vadd.f32 %v193, %v275
    %277 = vdwg.mxu0
    %278 = vmatprep.subr.mxu0 0.0
    %279 = vmatpush1.msra.mxu0 %v87
    %280 = vmatprep.subr.mxu0 0.0
    %281 = vmatpush1.msra.mxu0 %v90
    %282 = vmatprep.subr.mxu0 0.0
    %283 = vmatpush1.msra.mxu0 %v93
    %284 = vmatprep.subr.mxu0 0.0
    %285 = vmatpush1.msra.mxu0 %v96
    %286 = vmatprep.subr.mxu0 0.0
    %287 = vmatpush1.msra.mxu0 %v99
    %288 = vmatprep.subr.mxu0 0.0
    %289 = vmatpush1.msra.mxu0 %v102
    %290 = vmatprep.subr.mxu0 0.0
    %291 = vmatpush1.msra.mxu0 %v105
    %292 = vmatprep.subr.mxu0 0.0
    %293 = vmatpush1.msra.mxu0 %v108
    %294 = vmatprep.subr.mxu0 0.0
    %295 = vmatpush1.msra.mxu0 %v111
    %296 = vmatprep.subr.mxu0 0.0
    %297 = vmatpush1.msra.mxu0 %v114
    %298 = vmatprep.subr.mxu0 0.0
    %299 = vmatpush1.msra.mxu0 %v117
    %300 = vmatprep.subr.mxu0 0.0
    %301 = vmatpush1.msra.mxu0 %v120
    %302 = vmatprep.subr.mxu0 0.0
    %303 = vmatpush1.msra.mxu0 %v123
    %304 = vmatprep.subr.mxu0 0.0
    %305 = vmatpush1.msra.mxu0 %v126
    %306 = vmatprep.subr.mxu0 0.0
    %307 = vmatpush1.msra.mxu0 %v129
    %308 = vmatprep.subr.mxu0 0.0
    %309 = vmatpush1.msra.mxu0 %v132
    %310 = vmatprep.subr.mxu0 0.0
    %311 = vmatpush1.msra.mxu0 0.0
    %312 = vmatprep.subr.mxu0 0.0
    %313 = vmatpush1.msra.mxu0 0.0
    %314 = vmatprep.subr.mxu0 0.0
    %315 = vmatpush1.msra.mxu0 0.0
    %316 = vmatprep.subr.mxu0 0.0
    %317 = vmatpush1.msra.mxu0 0.0
    %318 = vmatprep.subr.mxu0 0.0
    %319 = vmatpush1.msra.mxu0 0.0
    %320 = vmatprep.subr.mxu0 0.0
    %321 = vmatpush1.msra.mxu0 0.0
    %322 = vmatprep.subr.mxu0 0.0
    %323 = vmatpush1.msra.mxu0 0.0
    %324 = vmatprep.subr.mxu0 0.0
    %325 = vmatpush1.msra.mxu0 0.0
    %326 = vmatprep.subr.mxu0 0.0
    %327 = vmatpush1.msra.mxu0 0.0
    %328 = vmatprep.subr.mxu0 0.0
    %329 = vmatpush1.msra.mxu0 0.0
    %330 = vmatprep.subr.mxu0 0.0
    %331 = vmatpush1.msra.mxu0 0.0
    %332 = vmatprep.subr.mxu0 0.0
    %333 = vmatpush1.msra.mxu0 0.0
    %334 = vmatprep.subr.mxu0 0.0
    %335 = vmatpush1.msra.mxu0 0.0
    %336 = vmatprep.subr.mxu0 0.0
    %337 = vmatpush1.msra.mxu0 0.0
    %338 = vmatprep.subr.mxu0 0.0
    %339 = vmatpush1.msra.mxu0 0.0
    %340 = vmatprep.subr.mxu0 0.0
    %341 = vmatpush1.msra.mxu0 0.0
    %342 = vmatprep.mubr.f32.mxu0 0.0
    %343 = vmatmul.mubr.f32.gmra.mrb[0].mxu0 %v183
    %v344 = vpop.f32.mrb[0].mxu0
    %v345 = vadd.f32 %v197, %v344
    %v346 = vpop.f32.mrb[0].mxu0
    %347 = vmatprep.mubr.f32.mxu0 0.0
    %348 = vmatmul.mubr.f32.gmra.mrb[0].mxu0 %v184
    %v349 = vpop.f32.mrb[0].mxu0
    %v350 = vadd.f32 %v197, %v349
    %v351 = vpop.f32.mrb[0].mxu0
    %352 = vdwg.mxu0
    %v354 = vrot.slane %v274, 6
    %vm356 = vcmask 523264
    %v357 = vsel %vm356, %v268, %v354
    %v359 = vrot.slane %v276, 6
    %v361 = vsel %vm356, %v270, %v359
    %v363 = vrot.slane %v350, 6
    %v365 = vsel %vm356, %v345, %v363
    %v367 = vlaneseq
    %v368 = vshrl.u32 %v367, 7
    %v369 = vsub.s32 0, %v368
    %v370 = vrot.slane %v182, %v369
    %v371 = vlaneseq
    %v372 = vshrl.u32 %v371, 7
    %v373 = vsub.s32 1, %v372
    %v374 = vrot.slane %v182, %v373
    %v375 = vlaneseq
    %v376 = vshrl.u32 %v375, 7
    %v377 = vsub.s32 2, %v376
    %v378 = vrot.slane %v182, %v377
    %382 = vmatprep.subr.mxu0 %v135
    %383 = vmatpush1.msra.mxu0 %v134
    %384 = vmatprep.subr.mxu0 %v138
    %385 = vmatpush1.msra.mxu0 %v137
    %386 = vmatprep.subr.mxu0 %v141
    %387 = vmatpush1.msra.mxu0 %v140
    %388 = vmatprep.subr.mxu0 %v144
    %389 = vmatpush1.msra.mxu0 %v143
    %390 = vmatprep.subr.mxu0 %v147
    %391 = vmatpush1.msra.mxu0 %v146
    %392 = vmatprep.subr.mxu0 %v150
    %393 = vmatpush1.msra.mxu0 %v149
    %394 = vmatprep.subr.mxu0 %v153
    %395 = vmatpush1.msra.mxu0 %v152
    %396 = vmatprep.subr.mxu0 %v156
    %397 = vmatpush1.msra.mxu0 %v155
    %398 = vmatprep.subr.mxu0 %v159
    %399 = vmatpush1.msra.mxu0 %v158
    %400 = vmatprep.subr.mxu0 %v162
    %401 = vmatpush1.msra.mxu0 %v161
    %402 = vmatprep.subr.mxu0 %v165
    %403 = vmatpush1.msra.mxu0 %v164
    %404 = vmatprep.subr.mxu0 %v168
    %405 = vmatpush1.msra.mxu0 %v167
    %406 = vmatprep.subr.mxu0 %v171
    %407 = vmatpush1.msra.mxu0 %v170
    %408 = vmatprep.subr.mxu0 %v174
    %409 = vmatpush1.msra.mxu0 %v173
    %410 = vmatprep.subr.mxu0 %v177
    %411 = vmatpush1.msra.mxu0 %v176
    %412 = vmatprep.subr.mxu0 %v180
    %413 = vmatpush1.msra.mxu0 %v179
    %414 = vmatprep.subr.mxu0 0.0
    %415 = vmatpush1.msra.mxu0 0.0
    %416 = vmatprep.subr.mxu0 0.0
    %417 = vmatpush1.msra.mxu0 0.0
    %418 = vmatprep.subr.mxu0 0.0
    %419 = vmatpush1.msra.mxu0 0.0
    %420 = vmatprep.subr.mxu0 0.0
    %421 = vmatpush1.msra.mxu0 0.0
    %422 = vmatprep.subr.mxu0 0.0
    %423 = vmatpush1.msra.mxu0 0.0
    %424 = vmatprep.subr.mxu0 0.0
    %425 = vmatpush1.msra.mxu0 0.0
    %426 = vmatprep.subr.mxu0 0.0
    %427 = vmatpush1.msra.mxu0 0.0
    %428 = vmatprep.subr.mxu0 0.0
    %429 = vmatpush1.msra.mxu0 0.0
    %430 = vmatprep.subr.mxu0 0.0
    %431 = vmatpush1.msra.mxu0 0.0
    %432 = vmatprep.subr.mxu0 0.0
    %433 = vmatpush1.msra.mxu0 0.0
    %434 = vmatprep.subr.mxu0 0.0
    %435 = vmatpush1.msra.mxu0 0.0
    %436 = vmatprep.subr.mxu0 0.0
    %437 = vmatpush1.msra.mxu0 0.0
    %438 = vmatprep.subr.mxu0 0.0
    %439 = vmatpush1.msra.mxu0 0.0
    %440 = vmatprep.subr.mxu0 0.0
    %441 = vmatpush1.msra.mxu0 0.0
    %442 = vmatprep.subr.mxu0 0.0
    %443 = vmatpush1.msra.mxu0 0.0
    %444 = vmatprep.subr.mxu0 0.0
    %445 = vmatpush1.msra.mxu0 0.0
    %446 = vmatprep.mubr.f32.mxu0 0.0
    %447 = vmatmul.mubr.f32.gmra.mrb[0].mxu0 0.0
    %v448 = vpop.f32.mrb[0].mxu0
    %v449 = vadd.f32 %v370, %v448
    %v450 = vpop.f32.mrb[0].mxu0
    %v451 = vadd.f32 %v374, %v450
    %452 = vdwg.mxu0
    %453 = vmatprep.subr.mxu0 0.0
    %454 = vmatpush1.msra.mxu0 %v136
    %455 = vmatprep.subr.mxu0 0.0
    %456 = vmatpush1.msra.mxu0 %v139
    %457 = vmatprep.subr.mxu0 0.0
    %458 = vmatpush1.msra.mxu0 %v142
    %459 = vmatprep.subr.mxu0 0.0
    %460 = vmatpush1.msra.mxu0 %v145
    %461 = vmatprep.subr.mxu0 0.0
    %462 = vmatpush1.msra.mxu0 %v148
    %463 = vmatprep.subr.mxu0 0.0
    %464 = vmatpush1.msra.mxu0 %v151
    %465 = vmatprep.subr.mxu0 0.0
    %466 = vmatpush1.msra.mxu0 %v154
    %467 = vmatprep.subr.mxu0 0.0
    %468 = vmatpush1.msra.mxu0 %v157
    %469 = vmatprep.subr.mxu0 0.0
    %470 = vmatpush1.msra.mxu0 %v160
    %471 = vmatprep.subr.mxu0 0.0
    %472 = vmatpush1.msra.mxu0 %v163
    %473 = vmatprep.subr.mxu0 0.0
    %474 = vmatpush1.msra.mxu0 %v166
    %475 = vmatprep.subr.mxu0 0.0
    %476 = vmatpush1.msra.mxu0 %v169
    %477 = vmatprep.subr.mxu0 0.0
    %478 = vmatpush1.msra.mxu0 %v172
    %479 = vmatprep.subr.mxu0 0.0
    %480 = vmatpush1.msra.mxu0 %v175
    %481 = vmatprep.subr.mxu0 0.0
    %482 = vmatpush1.msra.mxu0 %v178
    %483 = vmatprep.subr.mxu0 0.0
    %484 = vmatpush1.msra.mxu0 %v181
    %485 = vmatprep.subr.mxu0 0.0
    %486 = vmatpush1.msra.mxu0 0.0
    %487 = vmatprep.subr.mxu0 0.0
    %488 = vmatpush1.msra.mxu0 0.0
    %489 = vmatprep.subr.mxu0 0.0
    %490 = vmatpush1.msra.mxu0 0.0
    %491 = vmatprep.subr.mxu0 0.0
    %492 = vmatpush1.msra.mxu0 0.0
    %493 = vmatprep.subr.mxu0 0.0
    %494 = vmatpush1.msra.mxu0 0.0
    %495 = vmatprep.subr.mxu0 0.0
    %496 = vmatpush1.msra.mxu0 0.0
    %497 = vmatprep.subr.mxu0 0.0
    %498 = vmatpush1.msra.mxu0 0.0
    %499 = vmatprep.subr.mxu0 0.0
    %500 = vmatpush1.msra.mxu0 0.0
    %501 = vmatprep.subr.mxu0 0.0
    %502 = vmatpush1.msra.mxu0 0.0
    %503 = vmatprep.subr.mxu0 0.0
    %504 = vmatpush1.msra.mxu0 0.0
    %505 = vmatprep.subr.mxu0 0.0
    %506 = vmatpush1.msra.mxu0 0.0
    %507 = vmatprep.subr.mxu0 0.0
    %508 = vmatpush1.msra.mxu0 0.0
    %509 = vmatprep.subr.mxu0 0.0
    %510 = vmatpush1.msra.mxu0 0.0
    %511 = vmatprep.subr.mxu0 0.0
    %512 = vmatpush1.msra.mxu0 0.0
    %513 = vmatprep.subr.mxu0 0.0
    %514 = vmatpush1.msra.mxu0 0.0
    %515 = vmatprep.subr.mxu0 0.0
    %516 = vmatpush1.msra.mxu0 0.0
    %517 = vmatprep.mubr.f32.mxu0 0.0
    %518 = vmatmul.mubr.f32.gmra.mrb[0].mxu0 0.0
    %v519 = vpop.f32.mrb[0].mxu0
    %v520 = vadd.f32 %v378, %v519
    %v521 = vpop.f32.mrb[0].mxu0
    %522 = vdwg.mxu0
    %v523 = vadd.f32 %v357, %v449
    %v524 = vxor.u32 %v523, 2147483648
    %v525 = vmul.f32 %v524, 1.442695
    %v526 = vpow.pop %v525
    %v527 = vadd.f32 %v526, 1.0
    %v528 = vrcp.pop %v527
    %v529 = vmul.f32 1.0, %v528
    %v530 = vadd.f32 %v361, %v451
    %v531 = vxor.u32 %v530, 2147483648
    %v532 = vmul.f32 %v531, 1.442695
    %v533 = vpow.pop %v532
    %v534 = vadd.f32 %v533, 1.0
    %v535 = vrcp.pop %v534
    %v536 = vmul.f32 1.0, %v535
    %v537 = vmul.f32 %v529, %v520
    %v538 = vadd.f32 %v365, %v537
    %v539 = vtanh.pop %v538
    %v540 = vsub.f32 1.0, %v536
    %v541 = vmul.f32 %v540, %v539
    %v542 = vmul.f32 %v536, 0.0
    %v543 = vadd.f32 %v541, %v542
    %v544 = vrot.slane %v274, 2
    %v546 = vsel %vm356, %v268, %v544
    %v547 = vrot.slane %v276, 2
    %v549 = vsel %vm356, %v270, %v547
    %v550 = vrot.slane %v350, 2
    %v552 = vsel %vm356, %v345, %v550
    %553 = vmatprep.subr.mxu0 %v135
    %554 = vmatpush1.msra.mxu0 %v134
    %555 = vmatprep.subr.mxu0 %v138
    %556 = vmatpush1.msra.mxu0 %v137
    %557 = vmatprep.subr.mxu0 %v141
    %558 = vmatpush1.msra.mxu0 %v140
    %559 = vmatprep.subr.mxu0 %v144
    %560 = vmatpush1.msra.mxu0 %v143
    %561 = vmatprep.subr.mxu0 %v147
    %562 = vmatpush1.msra.mxu0 %v146
    %563 = vmatprep.subr.mxu0 %v150
    %564 = vmatpush1.msra.mxu0 %v149
    %565 = vmatprep.subr.mxu0 %v153
    %566 = vmatpush1.msra.mxu0 %v152
    %567 = vmatprep.subr.mxu0 %v156
    %568 = vmatpush1.msra.mxu0 %v155
    %569 = vmatprep.subr.mxu0 %v159
    %570 = vmatpush1.msra.mxu0 %v158
    %571 = vmatprep.subr.mxu0 %v162
    %572 = vmatpush1.msra.mxu0 %v161
    %573 = vmatprep.subr.mxu0 %v165
    %574 = vmatpush1.msra.mxu0 %v164
    %575 = vmatprep.subr.mxu0 %v168
    %576 = vmatpush1.msra.mxu0 %v167
    %577 = vmatprep.subr.mxu0 %v171
    %578 = vmatpush1.msra.mxu0 %v170
    %579 = vmatprep.subr.mxu0 %v174
    %580 = vmatpush1.msra.mxu0 %v173
    %581 = vmatprep.subr.mxu0 %v177
    %582 = vmatpush1.msra.mxu0 %v176
    %583 = vmatprep.subr.mxu0 %v180
    %584 = vmatpush1.msra.mxu0 %v179
    %585 = vmatprep.subr.mxu0 0.0
    %586 = vmatpush1.msra.mxu0 0.0
    %587 = vmatprep.subr.mxu0 0.0
    %588 = vmatpush1.msra.mxu0 0.0
    %589 = vmatprep.subr.mxu0 0.0
    %590 = vmatpush1.msra.mxu0 0.0
    %591 = vmatprep.subr.mxu0 0.0
    %592 = vmatpush1.msra.mxu0 0.0
    %593 = vmatprep.subr.mxu0 0.0
    %594 = vmatpush1.msra.mxu0 0.0
    %595 = vmatprep.subr.mxu0 0.0
    %596 = vmatpush1.msra.mxu0 0.0
    %597 = vmatprep.subr.mxu0 0.0
    %598 = vmatpush1.msra.mxu0 0.0
    %599 = vmatprep.subr.mxu0 0.0
    %600 = vmatpush1.msra.mxu0 0.0
    %601 = vmatprep.subr.mxu0 0.0
    %602 = vmatpush1.msra.mxu0 0.0
    %603 = vmatprep.subr.mxu0 0.0
    %604 = vmatpush1.msra.mxu0 0.0
    %605 = vmatprep.subr.mxu0 0.0
    %606 = vmatpush1.msra.mxu0 0.0
    %607 = vmatprep.subr.mxu0 0.0
    %608 = vmatpush1.msra.mxu0 0.0
    %609 = vmatprep.subr.mxu0 0.0
    %610 = vmatpush1.msra.mxu0 0.0
    %611 = vmatprep.subr.mxu0 0.0
    %612 = vmatpush1.msra.mxu0 0.0
    %613 = vmatprep.subr.mxu0 0.0
    %614 = vmatpush1.msra.mxu0 0.0
    %615 = vmatprep.subr.mxu0 0.0
    %616 = vmatpush1.msra.mxu0 0.0
    %617 = vmatprep.mubr.f32.mxu0 0.0
    %618 = vmatmul.mubr.f32.gmra.mrb[0].mxu0 %v543
    %v619 = vpop.f32.mrb[0].mxu0
    %v620 = vadd.f32 %v370, %v619
    %v621 = vpop.f32.mrb[0].mxu0
    %v622 = vadd.f32 %v374, %v621
    %623 = vdwg.mxu0
    %624 = vmatprep.subr.mxu0 0.0
    %625 = vmatpush1.msra.mxu0 %v136
    %626 = vmatprep.subr.mxu0 0.0
    %627 = vmatpush1.msra.mxu0 %v139
    %628 = vmatprep.subr.mxu0 0.0
    %629 = vmatpush1.msra.mxu0 %v142
    %630 = vmatprep.subr.mxu0 0.0
    %631 = vmatpush1.msra.mxu0 %v145
    %632 = vmatprep.subr.mxu0 0.0
    %633 = vmatpush1.msra.mxu0 %v148
    %634 = vmatprep.subr.mxu0 0.0
    %635 = vmatpush1.msra.mxu0 %v151
    %636 = vmatprep.subr.mxu0 0.0
    %637 = vmatpush1.msra.mxu0 %v154
    %638 = vmatprep.subr.mxu0 0.0
    %639 = vmatpush1.msra.mxu0 %v157
    %640 = vmatprep.subr.mxu0 0.0
    %641 = vmatpush1.msra.mxu0 %v160
    %642 = vmatprep.subr.mxu0 0.0
    %643 = vmatpush1.msra.mxu0 %v163
    %644 = vmatprep.subr.mxu0 0.0
    %645 = vmatpush1.msra.mxu0 %v166
    %646 = vmatprep.subr.mxu0 0.0
    %647 = vmatpush1.msra.mxu0 %v169
    %648 = vmatprep.subr.mxu0 0.0
    %649 = vmatpush1.msra.mxu0 %v172
    %650 = vmatprep.subr.mxu0 0.0
    %651 = vmatpush1.msra.mxu0 %v175
    %652 = vmatprep.subr.mxu0 0.0
    %653 = vmatpush1.msra.mxu0 %v178
    %654 = vmatprep.subr.mxu0 0.0
    %655 = vmatpush1.msra.mxu0 %v181
    %656 = vmatprep.subr.mxu0 0.0
    %657 = vmatpush1.msra.mxu0 0.0
    %658 = vmatprep.subr.mxu0 0.0
    %659 = vmatpush1.msra.mxu0 0.0
    %660 = vmatprep.subr.mxu0 0.0
    %661 = vmatpush1.msra.mxu0 0.0
    %662 = vmatprep.subr.mxu0 0.0
    %663 = vmatpush1.msra.mxu0 0.0
    %664 = vmatprep.subr.mxu0 0.0
    %665 = vmatpush1.msra.mxu0 0.0
    %666 = vmatprep.subr.mxu0 0.0
    %667 = vmatpush1.msra.mxu0 0.0
    %668 = vmatprep.subr.mxu0 0.0
    %669 = vmatpush1.msra.mxu0 0.0
    %670 = vmatprep.subr.mxu0 0.0
    %671 = vmatpush1.msra.mxu0 0.0
    %672 = vmatprep.subr.mxu0 0.0
    %673 = vmatpush1.msra.mxu0 0.0
    %674 = vmatprep.subr.mxu0 0.0
    %675 = vmatpush1.msra.mxu0 0.0
    %676 = vmatprep.subr.mxu0 0.0
    %677 = vmatpush1.msra.mxu0 0.0
    %678 = vmatprep.subr.mxu0 0.0
    %679 = vmatpush1.msra.mxu0 0.0
    %680 = vmatprep.subr.mxu0 0.0
    %681 = vmatpush1.msra.mxu0 0.0
    %682 = vmatprep.subr.mxu0 0.0
    %683 = vmatpush1.msra.mxu0 0.0
    %684 = vmatprep.subr.mxu0 0.0
    %685 = vmatpush1.msra.mxu0 0.0
    %686 = vmatprep.subr.mxu0 0.0
    %687 = vmatpush1.msra.mxu0 0.0
    %688 = vmatprep.mubr.f32.mxu0 0.0
    %689 = vmatmul.mubr.f32.gmra.mrb[0].mxu0 %v543
    %v690 = vpop.f32.mrb[0].mxu0
    %v691 = vadd.f32 %v378, %v690
    %v692 = vpop.f32.mrb[0].mxu0
    %693 = vdwg.mxu0
    %v695 = vrot.slane %v620, 6
    %v697 = vadd.f32 %v546, %v695
    %v698 = vxor.u32 %v697, 2147483648
    %v699 = vmul.f32 %v698, 1.442695
    %v700 = vpow.pop %v699
    %v701 = vadd.f32 %v700, 1.0
    %v702 = vrcp.pop %v701
    %v703 = vmul.f32 1.0, %v702
    %v705 = vrot.slane %v622, 6
    %v707 = vadd.f32 %v549, %v705
    %v708 = vxor.u32 %v707, 2147483648
    %v709 = vmul.f32 %v708, 1.442695
    %v710 = vpow.pop %v709
    %v711 = vadd.f32 %v710, 1.0
    %v712 = vrcp.pop %v711
    %v713 = vmul.f32 1.0, %v712
    %v715 = vrot.slane %v691, 6
    %v717 = vmul.f32 %v703, %v715
    %v718 = vadd.f32 %v552, %v717
    %v719 = vtanh.pop %v718
    %v720 = vsub.f32 1.0, %v713
    %v721 = vmul.f32 %v720, %v719
    %v723 = vrot.slane %v543, 6
    %v725 = vmul.f32 %v713, %v723
    %v726 = vadd.f32 %v721, %v725
    %v728 = vrot.slane %v726, 2
    %730 = vmatprep.subr.mxu0 %v135
    %731 = vmatpush1.msra.mxu0 %v134
    %732 = vmatprep.subr.mxu0 %v138
    %733 = vmatpush1.msra.mxu0 %v137
    %734 = vmatprep.subr.mxu0 %v141
    %735 = vmatpush1.msra.mxu0 %v140
    %736 = vmatprep.subr.mxu0 %v144
    %737 = vmatpush1.msra.mxu0 %v143
    %738 = vmatprep.subr.mxu0 %v147
    %739 = vmatpush1.msra.mxu0 %v146
    %740 = vmatprep.subr.mxu0 %v150
    %741 = vmatpush1.msra.mxu0 %v149
    %742 = vmatprep.subr.mxu0 %v153
    %743 = vmatpush1.msra.mxu0 %v152
    %744 = vmatprep.subr.mxu0 %v156
    %745 = vmatpush1.msra.mxu0 %v155
    %746 = vmatprep.subr.mxu0 %v159
    %747 = vmatpush1.msra.mxu0 %v158
    %748 = vmatprep.subr.mxu0 %v162
    %749 = vmatpush1.msra.mxu0 %v161
    %750 = vmatprep.subr.mxu0 %v165
    %751 = vmatpush1.msra.mxu0 %v164
    %752 = vmatprep.subr.mxu0 %v168
    %753 = vmatpush1.msra.mxu0 %v167
    %754 = vmatprep.subr.mxu0 %v171
    %755 = vmatpush1.msra.mxu0 %v170
    %756 = vmatprep.subr.mxu0 %v174
    %757 = vmatpush1.msra.mxu0 %v173
    %758 = vmatprep.subr.mxu0 %v177
    %759 = vmatpush1.msra.mxu0 %v176
    %760 = vmatprep.subr.mxu0 %v180
    %761 = vmatpush1.msra.mxu0 %v179
    %762 = vmatprep.subr.mxu0 0.0
    %763 = vmatpush1.msra.mxu0 0.0
    %764 = vmatprep.subr.mxu0 0.0
    %765 = vmatpush1.msra.mxu0 0.0
    %766 = vmatprep.subr.mxu0 0.0
    %767 = vmatpush1.msra.mxu0 0.0
    %768 = vmatprep.subr.mxu0 0.0
    %769 = vmatpush1.msra.mxu0 0.0
    %770 = vmatprep.subr.mxu0 0.0
    %771 = vmatpush1.msra.mxu0 0.0
    %772 = vmatprep.subr.mxu0 0.0
    %773 = vmatpush1.msra.mxu0 0.0
    %774 = vmatprep.subr.mxu0 0.0
    %775 = vmatpush1.msra.mxu0 0.0
    %776 = vmatprep.subr.mxu0 0.0
    %777 = vmatpush1.msra.mxu0 0.0
    %778 = vmatprep.subr.mxu0 0.0
    %779 = vmatpush1.msra.mxu0 0.0
    %780 = vmatprep.subr.mxu0 0.0
    %781 = vmatpush1.msra.mxu0 0.0
    %782 = vmatprep.subr.mxu0 0.0
    %783 = vmatpush1.msra.mxu0 0.0
    %784 = vmatprep.subr.mxu0 0.0
    %785 = vmatpush1.msra.mxu0 0.0
    %786 = vmatprep.subr.mxu0 0.0
    %787 = vmatpush1.msra.mxu0 0.0
    %788 = vmatprep.subr.mxu0 0.0
    %789 = vmatpush1.msra.mxu0 0.0
    %790 = vmatprep.subr.mxu0 0.0
    %791 = vmatpush1.msra.mxu0 0.0
    %792 = vmatprep.subr.mxu0 0.0
    %793 = vmatpush1.msra.mxu0 0.0
    %794 = vmatprep.mubr.f32.mxu0 0.0
    %795 = vmatmul.mubr.f32.gmra.mrb[0].mxu0 %v728
    %v796 = vpop.f32.mrb[0].mxu0
    %v797 = vadd.f32 %v370, %v796
    %v798 = vpop.f32.mrb[0].mxu0
    %v799 = vadd.f32 %v374, %v798
    %800 = vdwg.mxu0
    %801 = vmatprep.subr.mxu0 0.0
    %802 = vmatpush1.msra.mxu0 %v136
    %803 = vmatprep.subr.mxu0 0.0
    %804 = vmatpush1.msra.mxu0 %v139
    %805 = vmatprep.subr.mxu0 0.0
    %806 = vmatpush1.msra.mxu0 %v142
    %807 = vmatprep.subr.mxu0 0.0
    %808 = vmatpush1.msra.mxu0 %v145
    %809 = vmatprep.subr.mxu0 0.0
    %810 = vmatpush1.msra.mxu0 %v148
    %811 = vmatprep.subr.mxu0 0.0
    %812 = vmatpush1.msra.mxu0 %v151
    %813 = vmatprep.subr.mxu0 0.0
    %814 = vmatpush1.msra.mxu0 %v154
    %815 = vmatprep.subr.mxu0 0.0
    %816 = vmatpush1.msra.mxu0 %v157
    %817 = vmatprep.subr.mxu0 0.0
    %818 = vmatpush1.msra.mxu0 %v160
    %819 = vmatprep.subr.mxu0 0.0
    %820 = vmatpush1.msra.mxu0 %v163
    %821 = vmatprep.subr.mxu0 0.0
    %822 = vmatpush1.msra.mxu0 %v166
    %823 = vmatprep.subr.mxu0 0.0
    %824 = vmatpush1.msra.mxu0 %v169
    %825 = vmatprep.subr.mxu0 0.0
    %826 = vmatpush1.msra.mxu0 %v172
    %827 = vmatprep.subr.mxu0 0.0
    %828 = vmatpush1.msra.mxu0 %v175
    %829 = vmatprep.subr.mxu0 0.0
    %830 = vmatpush1.msra.mxu0 %v178
    %831 = vmatprep.subr.mxu0 0.0
    %832 = vmatpush1.msra.mxu0 %v181
    %833 = vmatprep.subr.mxu0 0.0
    %834 = vmatpush1.msra.mxu0 0.0
    %835 = vmatprep.subr.mxu0 0.0
    %836 = vmatpush1.msra.mxu0 0.0
    %837 = vmatprep.subr.mxu0 0.0
    %838 = vmatpush1.msra.mxu0 0.0
    %839 = vmatprep.subr.mxu0 0.0
    %840 = vmatpush1.msra.mxu0 0.0
    %841 = vmatprep.subr.mxu0 0.0
    %842 = vmatpush1.msra.mxu0 0.0
    %843 = vmatprep.subr.mxu0 0.0
    %844 = vmatpush1.msra.mxu0 0.0
    %845 = vmatprep.subr.mxu0 0.0
    %846 = vmatpush1.msra.mxu0 0.0
    %847 = vmatprep.subr.mxu0 0.0
    %848 = vmatpush1.msra.mxu0 0.0
    %849 = vmatprep.subr.mxu0 0.0
    %850 = vmatpush1.msra.mxu0 0.0
    %851 = vmatprep.subr.mxu0 0.0
    %852 = vmatpush1.msra.mxu0 0.0
    %853 = vmatprep.subr.mxu0 0.0
    %854 = vmatpush1.msra.mxu0 0.0
    %855 = vmatprep.subr.mxu0 0.0
    %856 = vmatpush1.msra.mxu0 0.0
    %857 = vmatprep.subr.mxu0 0.0
    %858 = vmatpush1.msra.mxu0 0.0
    %859 = vmatprep.subr.mxu0 0.0
    %860 = vmatpush1.msra.mxu0 0.0
    %861 = vmatprep.subr.mxu0 0.0
    %862 = vmatpush1.msra.mxu0 0.0
    %863 = vmatprep.subr.mxu0 0.0
    %864 = vmatpush1.msra.mxu0 0.0
    %865 = vmatprep.mubr.f32.mxu0 0.0
    %866 = vmatmul.mubr.f32.gmra.mrb[0].mxu0 %v728
    %v867 = vpop.f32.mrb[0].mxu0
    %v868 = vadd.f32 %v378, %v867
    %v869 = vpop.f32.mrb[0].mxu0
    %870 = vdwg.mxu0
    %v872 = vrot.slane %v797, 4
    %v874 = vadd.f32 %v357, %v872
    %v875 = vxor.u32 %v874, 2147483648
    %v876 = vmul.f32 %v875, 1.442695
    %v877 = vpow.pop %v876
    %v878 = vadd.f32 %v877, 1.0
    %v879 = vrcp.pop %v878
    %v880 = vmul.f32 1.0, %v879
    %v882 = vrot.slane %v799, 4
    %v884 = vadd.f32 %v361, %v882
    %v885 = vxor.u32 %v884, 2147483648
    %v886 = vmul.f32 %v885, 1.442695
    %v887 = vpow.pop %v886
    %v888 = vadd.f32 %v887, 1.0
    %v889 = vrcp.pop %v888
    %v890 = vmul.f32 1.0, %v889
    %v892 = vrot.slane %v868, 4
    %v894 = vmul.f32 %v880, %v892
    %v895 = vadd.f32 %v365, %v894
    %v896 = vtanh.pop %v895
    %v897 = vsub.f32 1.0, %v890
    %v898 = vmul.f32 %v897, %v896
    %v899 = vrot.slane %v726, 6
    %v901 = vmul.f32 %v890, %v899
    %v902 = vadd.f32 %v898, %v901
    %v904 = vrot.slane %v902, 4
    %906 = vmatprep.subr.mxu0 %v135
    %907 = vmatpush1.msra.mxu0 %v134
    %908 = vmatprep.subr.mxu0 %v138
    %909 = vmatpush1.msra.mxu0 %v137
    %910 = vmatprep.subr.mxu0 %v141
    %911 = vmatpush1.msra.mxu0 %v140
    %912 = vmatprep.subr.mxu0 %v144
    %913 = vmatpush1.msra.mxu0 %v143
    %914 = vmatprep.subr.mxu0 %v147
    %915 = vmatpush1.msra.mxu0 %v146
    %916 = vmatprep.subr.mxu0 %v150
    %917 = vmatpush1.msra.mxu0 %v149
    %918 = vmatprep.subr.mxu0 %v153
    %919 = vmatpush1.msra.mxu0 %v152
    %920 = vmatprep.subr.mxu0 %v156
    %921 = vmatpush1.msra.mxu0 %v155
    %922 = vmatprep.subr.mxu0 %v159
    %923 = vmatpush1.msra.mxu0 %v158
    %924 = vmatprep.subr.mxu0 %v162
    %925 = vmatpush1.msra.mxu0 %v161
    %926 = vmatprep.subr.mxu0 %v165
    %927 = vmatpush1.msra.mxu0 %v164
    %928 = vmatprep.subr.mxu0 %v168
    %929 = vmatpush1.msra.mxu0 %v167
    %930 = vmatprep.subr.mxu0 %v171
    %931 = vmatpush1.msra.mxu0 %v170
    %932 = vmatprep.subr.mxu0 %v174
    %933 = vmatpush1.msra.mxu0 %v173
    %934 = vmatprep.subr.mxu0 %v177
    %935 = vmatpush1.msra.mxu0 %v176
    %936 = vmatprep.subr.mxu0 %v180
    %937 = vmatpush1.msra.mxu0 %v179
    %938 = vmatprep.subr.mxu0 0.0
    %939 = vmatpush1.msra.mxu0 0.0
    %940 = vmatprep.subr.mxu0 0.0
    %941 = vmatpush1.msra.mxu0 0.0
    %942 = vmatprep.subr.mxu0 0.0
    %943 = vmatpush1.msra.mxu0 0.0
    %944 = vmatprep.subr.mxu0 0.0
    %945 = vmatpush1.msra.mxu0 0.0
    %946 = vmatprep.subr.mxu0 0.0
    %947 = vmatpush1.msra.mxu0 0.0
    %948 = vmatprep.subr.mxu0 0.0
    %949 = vmatpush1.msra.mxu0 0.0
    %950 = vmatprep.subr.mxu0 0.0
    %951 = vmatpush1.msra.mxu0 0.0
    %952 = vmatprep.subr.mxu0 0.0
    %953 = vmatpush1.msra.mxu0 0.0
    %954 = vmatprep.subr.mxu0 0.0
    %955 = vmatpush1.msra.mxu0 0.0
    %956 = vmatprep.subr.mxu0 0.0
    %957 = vmatpush1.msra.mxu0 0.0
    %958 = vmatprep.subr.mxu0 0.0
    %959 = vmatpush1.msra.mxu0 0.0
    %960 = vmatprep.subr.mxu0 0.0
    %961 = vmatpush1.msra.mxu0 0.0
    %962 = vmatprep.subr.mxu0 0.0
    %963 = vmatpush1.msra.mxu0 0.0
    %964 = vmatprep.subr.mxu0 0.0
    %965 = vmatpush1.msra.mxu0 0.0
    %966 = vmatprep.subr.mxu0 0.0
    %967 = vmatpush1.msra.mxu0 0.0
    %968 = vmatprep.subr.mxu0 0.0
    %969 = vmatpush1.msra.mxu0 0.0
    %970 = vmatprep.mubr.f32.mxu0 0.0
    %971 = vmatmul.mubr.f32.gmra.mrb[0].mxu0 %v904
    %v972 = vpop.f32.mrb[0].mxu0
    %v973 = vadd.f32 %v370, %v972
    %v974 = vpop.f32.mrb[0].mxu0
    %v975 = vadd.f32 %v374, %v974
    %976 = vdwg.mxu0
    %977 = vmatprep.subr.mxu0 0.0
    %978 = vmatpush1.msra.mxu0 %v136
    %979 = vmatprep.subr.mxu0 0.0
    %980 = vmatpush1.msra.mxu0 %v139
    %981 = vmatprep.subr.mxu0 0.0
    %982 = vmatpush1.msra.mxu0 %v142
    %983 = vmatprep.subr.mxu0 0.0
    %984 = vmatpush1.msra.mxu0 %v145
    %985 = vmatprep.subr.mxu0 0.0
    %986 = vmatpush1.msra.mxu0 %v148
    %987 = vmatprep.subr.mxu0 0.0
    %988 = vmatpush1.msra.mxu0 %v151
    %989 = vmatprep.subr.mxu0 0.0
    %990 = vmatpush1.msra.mxu0 %v154
    %991 = vmatprep.subr.mxu0 0.0
    %992 = vmatpush1.msra.mxu0 %v157
    %993 = vmatprep.subr.mxu0 0.0
    %994 = vmatpush1.msra.mxu0 %v160
    %995 = vmatprep.subr.mxu0 0.0
    %996 = vmatpush1.msra.mxu0 %v163
    %997 = vmatprep.subr.mxu0 0.0
    %998 = vmatpush1.msra.mxu0 %v166
    %999 = vmatprep.subr.mxu0 0.0
    %1000 = vmatpush1.msra.mxu0 %v169
    %1001 = vmatprep.subr.mxu0 0.0
    %1002 = vmatpush1.msra.mxu0 %v172
    %1003 = vmatprep.subr.mxu0 0.0
    %1004 = vmatpush1.msra.mxu0 %v175
    %1005 = vmatprep.subr.mxu0 0.0
    %1006 = vmatpush1.msra.mxu0 %v178
    %1007 = vmatprep.subr.mxu0 0.0
    %1008 = vmatpush1.msra.mxu0 %v181
    %1009 = vmatprep.subr.mxu0 0.0
    %1010 = vmatpush1.msra.mxu0 0.0
    %1011 = vmatprep.subr.mxu0 0.0
    %1012 = vmatpush1.msra.mxu0 0.0
    %1013 = vmatprep.subr.mxu0 0.0
    %1014 = vmatpush1.msra.mxu0 0.0
    %1015 = vmatprep.subr.mxu0 0.0
    %1016 = vmatpush1.msra.mxu0 0.0
    %1017 = vmatprep.subr.mxu0 0.0
    %1018 = vmatpush1.msra.mxu0 0.0
    %1019 = vmatprep.subr.mxu0 0.0
    %1020 = vmatpush1.msra.mxu0 0.0
    %1021 = vmatprep.subr.mxu0 0.0
    %1022 = vmatpush1.msra.mxu0 0.0
    %1023 = vmatprep.subr.mxu0 0.0
    %1024 = vmatpush1.msra.mxu0 0.0
    %1025 = vmatprep.subr.mxu0 0.0
    %1026 = vmatpush1.msra.mxu0 0.0
    %1027 = vmatprep.subr.mxu0 0.0
    %1028 = vmatpush1.msra.mxu0 0.0
    %1029 = vmatprep.subr.mxu0 0.0
    %1030 = vmatpush1.msra.mxu0 0.0
    %1031 = vmatprep.subr.mxu0 0.0
    %1032 = vmatpush1.msra.mxu0 0.0
    %1033 = vmatprep.subr.mxu0 0.0
    %1034 = vmatpush1.msra.mxu0 0.0
    %1035 = vmatprep.subr.mxu0 0.0
    %1036 = vmatpush1.msra.mxu0 0.0
    %1037 = vmatprep.subr.mxu0 0.0
    %1038 = vmatpush1.msra.mxu0 0.0
    %1039 = vmatprep.subr.mxu0 0.0
    %1040 = vmatpush1.msra.mxu0 0.0
    %1041 = vmatprep.mubr.f32.mxu0 0.0
    %1042 = vmatmul.mubr.f32.gmra.mrb[0].mxu0 %v904
    %v1043 = vpop.f32.mrb[0].mxu0
    %v1044 = vadd.f32 %v378, %v1043
    %v1045 = vpop.f32.mrb[0].mxu0
    %1046 = vdwg.mxu0
    %v1048 = vrot.slane %v973, 2
    %v1050 = vadd.f32 %v546, %v1048
    %v1051 = vxor.u32 %v1050, 2147483648
    %v1052 = vmul.f32 %v1051, 1.442695
    %v1053 = vpow.pop %v1052
    %v1054 = vadd.f32 %v1053, 1.0
    %v1055 = vrcp.pop %v1054
    %v1056 = vmul.f32 1.0, %v1055
    %v1058 = vrot.slane %v975, 2
    %v1060 = vadd.f32 %v549, %v1058
    %v1061 = vxor.u32 %v1060, 2147483648
    %v1062 = vmul.f32 %v1061, 1.442695
    %v1063 = vpow.pop %v1062
    %v1064 = vadd.f32 %v1063, 1.0
    %v1065 = vrcp.pop %v1064
    %v1066 = vmul.f32 1.0, %v1065
    %v1068 = vrot.slane %v1044, 2
    %v1070 = vmul.f32 %v1056, %v1068
    %v1071 = vadd.f32 %v552, %v1070
    %v1072 = vtanh.pop %v1071
    %v1073 = vsub.f32 1.0, %v1066
    %v1074 = vmul.f32 %v1073, %v1072
    %v1075 = vrot.slane %v902, 6
    %v1077 = vmul.f32 %v1066, %v1075
    %v1078 = vadd.f32 %v1074, %v1077
    %v1080 = vrot.slane %v268, 6
    %v1082 = vsel %vm356, %v274, %v1080
    %v1084 = vrot.slane %v270, 6
    %v1086 = vsel %vm356, %v276, %v1084
    %v1088 = vrot.slane %v345, 6
    %v1090 = vsel %vm356, %v350, %v1088
    %v1092 = vrot.slane %v1078, 6
    %1094 = vmatprep.subr.mxu0 %v135
    %1095 = vmatpush1.msra.mxu0 %v134
    %1096 = vmatprep.subr.mxu0 %v138
    %1097 = vmatpush1.msra.mxu0 %v137
    %1098 = vmatprep.subr.mxu0 %v141
    %1099 = vmatpush1.msra.mxu0 %v140
    %1100 = vmatprep.subr.mxu0 %v144
    %1101 = vmatpush1.msra.mxu0 %v143
    %1102 = vmatprep.subr.mxu0 %v147
    %1103 = vmatpush1.msra.mxu0 %v146
    %1104 = vmatprep.subr.mxu0 %v150
    %1105 = vmatpush1.msra.mxu0 %v149
    %1106 = vmatprep.subr.mxu0 %v153
    %1107 = vmatpush1.msra.mxu0 %v152
    %1108 = vmatprep.subr.mxu0 %v156
    %1109 = vmatpush1.msra.mxu0 %v155
    %1110 = vmatprep.subr.mxu0 %v159
    %1111 = vmatpush1.msra.mxu0 %v158
    %1112 = vmatprep.subr.mxu0 %v162
    %1113 = vmatpush1.msra.mxu0 %v161
    %1114 = vmatprep.subr.mxu0 %v165
    %1115 = vmatpush1.msra.mxu0 %v164
    %1116 = vmatprep.subr.mxu0 %v168
    %1117 = vmatpush1.msra.mxu0 %v167
    %1118 = vmatprep.subr.mxu0 %v171
    %1119 = vmatpush1.msra.mxu0 %v170
    %1120 = vmatprep.subr.mxu0 %v174
    %1121 = vmatpush1.msra.mxu0 %v173
    %1122 = vmatprep.subr.mxu0 %v177
    %1123 = vmatpush1.msra.mxu0 %v176
    %1124 = vmatprep.subr.mxu0 %v180
    %1125 = vmatpush1.msra.mxu0 %v179
    %1126 = vmatprep.subr.mxu0 0.0
    %1127 = vmatpush1.msra.mxu0 0.0
    %1128 = vmatprep.subr.mxu0 0.0
    %1129 = vmatpush1.msra.mxu0 0.0
    %1130 = vmatprep.subr.mxu0 0.0
    %1131 = vmatpush1.msra.mxu0 0.0
    %1132 = vmatprep.subr.mxu0 0.0
    %1133 = vmatpush1.msra.mxu0 0.0
    %1134 = vmatprep.subr.mxu0 0.0
    %1135 = vmatpush1.msra.mxu0 0.0
    %1136 = vmatprep.subr.mxu0 0.0
    %1137 = vmatpush1.msra.mxu0 0.0
    %1138 = vmatprep.subr.mxu0 0.0
    %1139 = vmatpush1.msra.mxu0 0.0
    %1140 = vmatprep.subr.mxu0 0.0
    %1141 = vmatpush1.msra.mxu0 0.0
    %1142 = vmatprep.subr.mxu0 0.0
    %1143 = vmatpush1.msra.mxu0 0.0
    %1144 = vmatprep.subr.mxu0 0.0
    %1145 = vmatpush1.msra.mxu0 0.0
    %1146 = vmatprep.subr.mxu0 0.0
    %1147 = vmatpush1.msra.mxu0 0.0
    %1148 = vmatprep.subr.mxu0 0.0
    %1149 = vmatpush1.msra.mxu0 0.0
    %1150 = vmatprep.subr.mxu0 0.0
    %1151 = vmatpush1.msra.mxu0 0.0
    %1152 = vmatprep.subr.mxu0 0.0
    %1153 = vmatpush1.msra.mxu0 0.0
    %1154 = vmatprep.subr.mxu0 0.0
    %1155 = vmatpush1.msra.mxu0 0.0
    %1156 = vmatprep.subr.mxu0 0.0
    %1157 = vmatpush1.msra.mxu0 0.0
    %1158 = vmatprep.mubr.f32.mxu0 0.0
    %1159 = vmatmul.mubr.f32.gmra.mrb[0].mxu0 %v1092
    %v1160 = vpop.f32.mrb[0].mxu0
    %v1161 = vadd.f32 %v370, %v1160
    %v1162 = vpop.f32.mrb[0].mxu0
    %v1163 = vadd.f32 %v374, %v1162
    %1164 = vdwg.mxu0
    %1165 = vmatprep.subr.mxu0 0.0
    %1166 = vmatpush1.msra.mxu0 %v136
    %1167 = vmatprep.subr.mxu0 0.0
    %1168 = vmatpush1.msra.mxu0 %v139
    %1169 = vmatprep.subr.mxu0 0.0
    %1170 = vmatpush1.msra.mxu0 %v142
    %1171 = vmatprep.subr.mxu0 0.0
    %1172 = vmatpush1.msra.mxu0 %v145
    %1173 = vmatprep.subr.mxu0 0.0
    %1174 = vmatpush1.msra.mxu0 %v148
    %1175 = vmatprep.subr.mxu0 0.0
    %1176 = vmatpush1.msra.mxu0 %v151
    %1177 = vmatprep.subr.mxu0 0.0
    %1178 = vmatpush1.msra.mxu0 %v154
    %1179 = vmatprep.subr.mxu0 0.0
    %1180 = vmatpush1.msra.mxu0 %v157
    %1181 = vmatprep.subr.mxu0 0.0
    %1182 = vmatpush1.msra.mxu0 %v160
    %1183 = vmatprep.subr.mxu0 0.0
    %1184 = vmatpush1.msra.mxu0 %v163
    %1185 = vmatprep.subr.mxu0 0.0
    %1186 = vmatpush1.msra.mxu0 %v166
    %1187 = vmatprep.subr.mxu0 0.0
    %1188 = vmatpush1.msra.mxu0 %v169
    %1189 = vmatprep.subr.mxu0 0.0
    %1190 = vmatpush1.msra.mxu0 %v172
    %1191 = vmatprep.subr.mxu0 0.0
    %1192 = vmatpush1.msra.mxu0 %v175
    %1193 = vmatprep.subr.mxu0 0.0
    %1194 = vmatpush1.msra.mxu0 %v178
    %1195 = vmatprep.subr.mxu0 0.0
    %1196 = vmatpush1.msra.mxu0 %v181
    %1197 = vmatprep.subr.mxu0 0.0
    %1198 = vmatpush1.msra.mxu0 0.0
    %1199 = vmatprep.subr.mxu0 0.0
    %1200 = vmatpush1.msra.mxu0 0.0
    %1201 = vmatprep.subr.mxu0 0.0
    %1202 = vmatpush1.msra.mxu0 0.0
    %1203 = vmatprep.subr.mxu0 0.0
    %1204 = vmatpush1.msra.mxu0 0.0
    %1205 = vmatprep.subr.mxu0 0.0
    %1206 = vmatpush1.msra.mxu0 0.0
    %1207 = vmatprep.subr.mxu0 0.0
    %1208 = vmatpush1.msra.mxu0 0.0
    %1209 = vmatprep.subr.mxu0 0.0
    %1210 = vmatpush1.msra.mxu0 0.0
    %1211 = vmatprep.subr.mxu0 0.0
    %1212 = vmatpush1.msra.mxu0 0.0
    %1213 = vmatprep.subr.mxu0 0.0
    %1214 = vmatpush1.msra.mxu0 0.0
    %1215 = vmatprep.subr.mxu0 0.0
    %1216 = vmatpush1.msra.mxu0 0.0
    %1217 = vmatprep.subr.mxu0 0.0
    %1218 = vmatpush1.msra.mxu0 0.0
    %1219 = vmatprep.subr.mxu0 0.0
    %1220 = vmatpush1.msra.mxu0 0.0
    %1221 = vmatprep.subr.mxu0 0.0
    %1222 = vmatpush1.msra.mxu0 0.0
    %1223 = vmatprep.subr.mxu0 0.0
    %1224 = vmatpush1.msra.mxu0 0.0
    %1225 = vmatprep.subr.mxu0 0.0
    %1226 = vmatpush1.msra.mxu0 0.0
    %1227 = vmatprep.subr.mxu0 0.0
    %1228 = vmatpush1.msra.mxu0 0.0
    %1229 = vmatprep.mubr.f32.mxu0 0.0
    %1230 = vmatmul.mubr.f32.gmra.mrb[0].mxu0 %v1092
    %v1231 = vpop.f32.mrb[0].mxu0
    %v1232 = vadd.f32 %v378, %v1231
    %v1233 = vpop.f32.mrb[0].mxu0
    %1234 = vdwg.mxu0
    %v1235 = vadd.f32 %v1082, %v1161
    %v1236 = vxor.u32 %v1235, 2147483648
    %v1237 = vmul.f32 %v1236, 1.442695
    %v1238 = vpow.pop %v1237
    %v1239 = vadd.f32 %v1238, 1.0
    %v1240 = vrcp.pop %v1239
    %v1241 = vmul.f32 1.0, %v1240
    %v1242 = vadd.f32 %v1086, %v1163
    %v1243 = vxor.u32 %v1242, 2147483648
    %v1244 = vmul.f32 %v1243, 1.442695
    %v1245 = vpow.pop %v1244
    %v1246 = vadd.f32 %v1245, 1.0
    %v1247 = vrcp.pop %v1246
    %v1248 = vmul.f32 1.0, %v1247
    %v1249 = vmul.f32 %v1241, %v1232
    %v1250 = vadd.f32 %v1090, %v1249
    %v1251 = vtanh.pop %v1250
    %v1252 = vsub.f32 1.0, %v1248
    %v1253 = vmul.f32 %v1252, %v1251
    %v1254 = vmul.f32 %v1248, %v1092
    %v1255 = vadd.f32 %v1253, %v1254
    %v1256 = vrot.slane %v268, 2
    %v1258 = vsel %vm356, %v274, %v1256
    %v1259 = vrot.slane %v270, 2
    %v1261 = vsel %vm356, %v276, %v1259
    %v1262 = vrot.slane %v345, 2
    %v1264 = vsel %vm356, %v350, %v1262
    %1265 = vmatprep.subr.mxu0 %v135
    %1266 = vmatpush1.msra.mxu0 %v134
    %1267 = vmatprep.subr.mxu0 %v138
    %1268 = vmatpush1.msra.mxu0 %v137
    %1269 = vmatprep.subr.mxu0 %v141
    %1270 = vmatpush1.msra.mxu0 %v140
    %1271 = vmatprep.subr.mxu0 %v144
    %1272 = vmatpush1.msra.mxu0 %v143
    %1273 = vmatprep.subr.mxu0 %v147
    %1274 = vmatpush1.msra.mxu0 %v146
    %1275 = vmatprep.subr.mxu0 %v150
    %1276 = vmatpush1.msra.mxu0 %v149
    %1277 = vmatprep.subr.mxu0 %v153
    %1278 = vmatpush1.msra.mxu0 %v152
    %1279 = vmatprep.subr.mxu0 %v156
    %1280 = vmatpush1.msra.mxu0 %v155
    %1281 = vmatprep.subr.mxu0 %v159
    %1282 = vmatpush1.msra.mxu0 %v158
    %1283 = vmatprep.subr.mxu0 %v162
    %1284 = vmatpush1.msra.mxu0 %v161
    %1285 = vmatprep.subr.mxu0 %v165
    %1286 = vmatpush1.msra.mxu0 %v164
    %1287 = vmatprep.subr.mxu0 %v168
    %1288 = vmatpush1.msra.mxu0 %v167
    %1289 = vmatprep.subr.mxu0 %v171
    %1290 = vmatpush1.msra.mxu0 %v170
    %1291 = vmatprep.subr.mxu0 %v174
    %1292 = vmatpush1.msra.mxu0 %v173
    %1293 = vmatprep.subr.mxu0 %v177
    %1294 = vmatpush1.msra.mxu0 %v176
    %1295 = vmatprep.subr.mxu0 %v180
    %1296 = vmatpush1.msra.mxu0 %v179
    %1297 = vmatprep.subr.mxu0 0.0
    %1298 = vmatpush1.msra.mxu0 0.0
    %1299 = vmatprep.subr.mxu0 0.0
    %1300 = vmatpush1.msra.mxu0 0.0
    %1301 = vmatprep.subr.mxu0 0.0
    %1302 = vmatpush1.msra.mxu0 0.0
    %1303 = vmatprep.subr.mxu0 0.0
    %1304 = vmatpush1.msra.mxu0 0.0
    %1305 = vmatprep.subr.mxu0 0.0
    %1306 = vmatpush1.msra.mxu0 0.0
    %1307 = vmatprep.subr.mxu0 0.0
    %1308 = vmatpush1.msra.mxu0 0.0
    %1309 = vmatprep.subr.mxu0 0.0
    %1310 = vmatpush1.msra.mxu0 0.0
    %1311 = vmatprep.subr.mxu0 0.0
    %1312 = vmatpush1.msra.mxu0 0.0
    %1313 = vmatprep.subr.mxu0 0.0
    %1314 = vmatpush1.msra.mxu0 0.0
    %1315 = vmatprep.subr.mxu0 0.0
    %1316 = vmatpush1.msra.mxu0 0.0
    %1317 = vmatprep.subr.mxu0 0.0
    %1318 = vmatpush1.msra.mxu0 0.0
    %1319 = vmatprep.subr.mxu0 0.0
    %1320 = vmatpush1.msra.mxu0 0.0
    %1321 = vmatprep.subr.mxu0 0.0
    %1322 = vmatpush1.msra.mxu0 0.0
    %1323 = vmatprep.subr.mxu0 0.0
    %1324 = vmatpush1.msra.mxu0 0.0
    %1325 = vmatprep.subr.mxu0 0.0
    %1326 = vmatpush1.msra.mxu0 0.0
    %1327 = vmatprep.subr.mxu0 0.0
    %1328 = vmatpush1.msra.mxu0 0.0
    %1329 = vmatprep.mubr.f32.mxu0 0.0
    %1330 = vmatmul.mubr.f32.gmra.mrb[0].mxu0 %v1255
    %v1331 = vpop.f32.mrb[0].mxu0
    %v1332 = vadd.f32 %v370, %v1331
    %v1333 = vpop.f32.mrb[0].mxu0
    %v1334 = vadd.f32 %v374, %v1333
    %1335 = vdwg.mxu0
    %1336 = vmatprep.subr.mxu0 0.0
    %1337 = vmatpush1.msra.mxu0 %v136
    %1338 = vmatprep.subr.mxu0 0.0
    %1339 = vmatpush1.msra.mxu0 %v139
    %1340 = vmatprep.subr.mxu0 0.0
    %1341 = vmatpush1.msra.mxu0 %v142
    %1342 = vmatprep.subr.mxu0 0.0
    %1343 = vmatpush1.msra.mxu0 %v145
    %1344 = vmatprep.subr.mxu0 0.0
    %1345 = vmatpush1.msra.mxu0 %v148
    %1346 = vmatprep.subr.mxu0 0.0
    %1347 = vmatpush1.msra.mxu0 %v151
    %1348 = vmatprep.subr.mxu0 0.0
    %1349 = vmatpush1.msra.mxu0 %v154
    %1350 = vmatprep.subr.mxu0 0.0
    %1351 = vmatpush1.msra.mxu0 %v157
    %1352 = vmatprep.subr.mxu0 0.0
    %1353 = vmatpush1.msra.mxu0 %v160
    %1354 = vmatprep.subr.mxu0 0.0
    %1355 = vmatpush1.msra.mxu0 %v163
    %1356 = vmatprep.subr.mxu0 0.0
    %1357 = vmatpush1.msra.mxu0 %v166
    %1358 = vmatprep.subr.mxu0 0.0
    %1359 = vmatpush1.msra.mxu0 %v169
    %1360 = vmatprep.subr.mxu0 0.0
    %1361 = vmatpush1.msra.mxu0 %v172
    %1362 = vmatprep.subr.mxu0 0.0
    %1363 = vmatpush1.msra.mxu0 %v175
    %1364 = vmatprep.subr.mxu0 0.0
    %1365 = vmatpush1.msra.mxu0 %v178
    %1366 = vmatprep.subr.mxu0 0.0
    %1367 = vmatpush1.msra.mxu0 %v181
    %1368 = vmatprep.subr.mxu0 0.0
    %1369 = vmatpush1.msra.mxu0 0.0
    %1370 = vmatprep.subr.mxu0 0.0
    %1371 = vmatpush1.msra.mxu0 0.0
    %1372 = vmatprep.subr.mxu0 0.0
    %1373 = vmatpush1.msra.mxu0 0.0
    %1374 = vmatprep.subr.mxu0 0.0
    %1375 = vmatpush1.msra.mxu0 0.0
    %1376 = vmatprep.subr.mxu0 0.0
    %1377 = vmatpush1.msra.mxu0 0.0
    %1378 = vmatprep.subr.mxu0 0.0
    %1379 = vmatpush1.msra.mxu0 0.0
    %1380 = vmatprep.subr.mxu0 0.0
    %1381 = vmatpush1.msra.mxu0 0.0
    %1382 = vmatprep.subr.mxu0 0.0
    %1383 = vmatpush1.msra.mxu0 0.0
    %1384 = vmatprep.subr.mxu0 0.0
    %1385 = vmatpush1.msra.mxu0 0.0
    %1386 = vmatprep.subr.mxu0 0.0
    %1387 = vmatpush1.msra.mxu0 0.0
    %1388 = vmatprep.subr.mxu0 0.0
    %1389 = vmatpush1.msra.mxu0 0.0
    %1390 = vmatprep.subr.mxu0 0.0
    %1391 = vmatpush1.msra.mxu0 0.0
    %1392 = vmatprep.subr.mxu0 0.0
    %1393 = vmatpush1.msra.mxu0 0.0
    %1394 = vmatprep.subr.mxu0 0.0
    %1395 = vmatpush1.msra.mxu0 0.0
    %1396 = vmatprep.subr.mxu0 0.0
    %1397 = vmatpush1.msra.mxu0 0.0
    %1398 = vmatprep.subr.mxu0 0.0
    %1399 = vmatpush1.msra.mxu0 0.0
    %1400 = vmatprep.mubr.f32.mxu0 0.0
    %1401 = vmatmul.mubr.f32.gmra.mrb[0].mxu0 %v1255
    %v1402 = vpop.f32.mrb[0].mxu0
    %v1403 = vadd.f32 %v378, %v1402
    %v1404 = vpop.f32.mrb[0].mxu0
    %1405 = vdwg.mxu0
    %v1407 = vrot.slane %v1332, 6
    %v1409 = vadd.f32 %v1258, %v1407
    %v1410 = vxor.u32 %v1409, 2147483648
    %v1411 = vmul.f32 %v1410, 1.442695
    %v1412 = vpow.pop %v1411
    %v1413 = vadd.f32 %v1412, 1.0
    %v1414 = vrcp.pop %v1413
    %v1415 = vmul.f32 1.0, %v1414
    %v1417 = vrot.slane %v1334, 6
    %v1419 = vadd.f32 %v1261, %v1417
    %v1420 = vxor.u32 %v1419, 2147483648
    %v1421 = vmul.f32 %v1420, 1.442695
    %v1422 = vpow.pop %v1421
    %v1423 = vadd.f32 %v1422, 1.0
    %v1424 = vrcp.pop %v1423
    %v1425 = vmul.f32 1.0, %v1424
    %v1427 = vrot.slane %v1403, 6
    %v1429 = vmul.f32 %v1415, %v1427
    %v1430 = vadd.f32 %v1264, %v1429
    %v1431 = vtanh.pop %v1430
    %v1432 = vsub.f32 1.0, %v1425
    %v1433 = vmul.f32 %v1432, %v1431
    %v1435 = vrot.slane %v1255, 6
    %v1437 = vmul.f32 %v1425, %v1435
    %v1438 = vadd.f32 %v1433, %v1437
    %v1440 = vrot.slane %v1438, 2
    %1442 = vmatprep.subr.mxu0 %v135
    %1443 = vmatpush1.msra.mxu0 %v134
    %1444 = vmatprep.subr.mxu0 %v138
    %1445 = vmatpush1.msra.mxu0 %v137
    %1446 = vmatprep.subr.mxu0 %v141
    %1447 = vmatpush1.msra.mxu0 %v140
    %1448 = vmatprep.subr.mxu0 %v144
    %1449 = vmatpush1.msra.mxu0 %v143
    %1450 = vmatprep.subr.mxu0 %v147
    %1451 = vmatpush1.msra.mxu0 %v146
    %1452 = vmatprep.subr.mxu0 %v150
    %1453 = vmatpush1.msra.mxu0 %v149
    %1454 = vmatprep.subr.mxu0 %v153
    %1455 = vmatpush1.msra.mxu0 %v152
    %1456 = vmatprep.subr.mxu0 %v156
    %1457 = vmatpush1.msra.mxu0 %v155
    %1458 = vmatprep.subr.mxu0 %v159
    %1459 = vmatpush1.msra.mxu0 %v158
    %1460 = vmatprep.subr.mxu0 %v162
    %1461 = vmatpush1.msra.mxu0 %v161
    %1462 = vmatprep.subr.mxu0 %v165
    %1463 = vmatpush1.msra.mxu0 %v164
    %1464 = vmatprep.subr.mxu0 %v168
    %1465 = vmatpush1.msra.mxu0 %v167
    %1466 = vmatprep.subr.mxu0 %v171
    %1467 = vmatpush1.msra.mxu0 %v170
    %1468 = vmatprep.subr.mxu0 %v174
    %1469 = vmatpush1.msra.mxu0 %v173
    %1470 = vmatprep.subr.mxu0 %v177
    %1471 = vmatpush1.msra.mxu0 %v176
    %1472 = vmatprep.subr.mxu0 %v180
    %1473 = vmatpush1.msra.mxu0 %v179
    %1474 = vmatprep.subr.mxu0 0.0
    %1475 = vmatpush1.msra.mxu0 0.0
    %1476 = vmatprep.subr.mxu0 0.0
    %1477 = vmatpush1.msra.mxu0 0.0
    %1478 = vmatprep.subr.mxu0 0.0
    %1479 = vmatpush1.msra.mxu0 0.0
    %1480 = vmatprep.subr.mxu0 0.0
    %1481 = vmatpush1.msra.mxu0 0.0
    %1482 = vmatprep.subr.mxu0 0.0
    %1483 = vmatpush1.msra.mxu0 0.0
    %1484 = vmatprep.subr.mxu0 0.0
    %1485 = vmatpush1.msra.mxu0 0.0
    %1486 = vmatprep.subr.mxu0 0.0
    %1487 = vmatpush1.msra.mxu0 0.0
    %1488 = vmatprep.subr.mxu0 0.0
    %1489 = vmatpush1.msra.mxu0 0.0
    %1490 = vmatprep.subr.mxu0 0.0
    %1491 = vmatpush1.msra.mxu0 0.0
    %1492 = vmatprep.subr.mxu0 0.0
    %1493 = vmatpush1.msra.mxu0 0.0
    %1494 = vmatprep.subr.mxu0 0.0
    %1495 = vmatpush1.msra.mxu0 0.0
    %1496 = vmatprep.subr.mxu0 0.0
    %1497 = vmatpush1.msra.mxu0 0.0
    %1498 = vmatprep.subr.mxu0 0.0
    %1499 = vmatpush1.msra.mxu0 0.0
    %1500 = vmatprep.subr.mxu0 0.0
    %1501 = vmatpush1.msra.mxu0 0.0
    %1502 = vmatprep.subr.mxu0 0.0
    %1503 = vmatpush1.msra.mxu0 0.0
    %1504 = vmatprep.subr.mxu0 0.0
    %1505 = vmatpush1.msra.mxu0 0.0
    %1506 = vmatprep.mubr.f32.mxu0 0.0
    %1507 = vmatmul.mubr.f32.gmra.mrb[0].mxu0 %v1440
    %v1508 = vpop.f32.mrb[0].mxu0
    %v1509 = vadd.f32 %v370, %v1508
    %v1510 = vpop.f32.mrb[0].mxu0
    %v1511 = vadd.f32 %v374, %v1510
    %1512 = vdwg.mxu0
    %1513 = vmatprep.subr.mxu0 0.0
    %1514 = vmatpush1.msra.mxu0 %v136
    %1515 = vmatprep.subr.mxu0 0.0
    %1516 = vmatpush1.msra.mxu0 %v139
    %1517 = vmatprep.subr.mxu0 0.0
    %1518 = vmatpush1.msra.mxu0 %v142
    %1519 = vmatprep.subr.mxu0 0.0
    %1520 = vmatpush1.msra.mxu0 %v145
    %1521 = vmatprep.subr.mxu0 0.0
    %1522 = vmatpush1.msra.mxu0 %v148
    %1523 = vmatprep.subr.mxu0 0.0
    %1524 = vmatpush1.msra.mxu0 %v151
    %1525 = vmatprep.subr.mxu0 0.0
    %1526 = vmatpush1.msra.mxu0 %v154
    %1527 = vmatprep.subr.mxu0 0.0
    %1528 = vmatpush1.msra.mxu0 %v157
    %1529 = vmatprep.subr.mxu0 0.0
    %1530 = vmatpush1.msra.mxu0 %v160
    %1531 = vmatprep.subr.mxu0 0.0
    %1532 = vmatpush1.msra.mxu0 %v163
    %1533 = vmatprep.subr.mxu0 0.0
    %1534 = vmatpush1.msra.mxu0 %v166
    %1535 = vmatprep.subr.mxu0 0.0
    %1536 = vmatpush1.msra.mxu0 %v169
    %1537 = vmatprep.subr.mxu0 0.0
    %1538 = vmatpush1.msra.mxu0 %v172
    %1539 = vmatprep.subr.mxu0 0.0
    %1540 = vmatpush1.msra.mxu0 %v175
    %1541 = vmatprep.subr.mxu0 0.0
    %1542 = vmatpush1.msra.mxu0 %v178
    %1543 = vmatprep.subr.mxu0 0.0
    %1544 = vmatpush1.msra.mxu0 %v181
    %1545 = vmatprep.subr.mxu0 0.0
    %1546 = vmatpush1.msra.mxu0 0.0
    %1547 = vmatprep.subr.mxu0 0.0
    %1548 = vmatpush1.msra.mxu0 0.0
    %1549 = vmatprep.subr.mxu0 0.0
    %1550 = vmatpush1.msra.mxu0 0.0
    %1551 = vmatprep.subr.mxu0 0.0
    %1552 = vmatpush1.msra.mxu0 0.0
    %1553 = vmatprep.subr.mxu0 0.0
    %1554 = vmatpush1.msra.mxu0 0.0
    %1555 = vmatprep.subr.mxu0 0.0
    %1556 = vmatpush1.msra.mxu0 0.0
    %1557 = vmatprep.subr.mxu0 0.0
    %1558 = vmatpush1.msra.mxu0 0.0
    %1559 = vmatprep.subr.mxu0 0.0
    %1560 = vmatpush1.msra.mxu0 0.0
    %1561 = vmatprep.subr.mxu0 0.0
    %1562 = vmatpush1.msra.mxu0 0.0
    %1563 = vmatprep.subr.mxu0 0.0
    %1564 = vmatpush1.msra.mxu0 0.0
    %1565 = vmatprep.subr.mxu0 0.0
    %1566 = vmatpush1.msra.mxu0 0.0
    %1567 = vmatprep.subr.mxu0 0.0
    %1568 = vmatpush1.msra.mxu0 0.0
    %1569 = vmatprep.subr.mxu0 0.0
    %1570 = vmatpush1.msra.mxu0 0.0
    %1571 = vmatprep.subr.mxu0 0.0
    %1572 = vmatpush1.msra.mxu0 0.0
    %1573 = vmatprep.subr.mxu0 0.0
    %1574 = vmatpush1.msra.mxu0 0.0
    %1575 = vmatprep.subr.mxu0 0.0
    %1576 = vmatpush1.msra.mxu0 0.0
    %1577 = vmatprep.mubr.f32.mxu0 0.0
    %1578 = vmatmul.mubr.f32.gmra.mrb[0].mxu0 %v1440
    %v1579 = vpop.f32.mrb[0].mxu0
    %v1580 = vadd.f32 %v378, %v1579
    %v1581 = vpop.f32.mrb[0].mxu0
    %1582 = vdwg.mxu0
    %v1584 = vrot.slane %v1509, 4
    %v1586 = vadd.f32 %v1082, %v1584
    %v1587 = vxor.u32 %v1586, 2147483648
    %v1588 = vmul.f32 %v1587, 1.442695
    %v1589 = vpow.pop %v1588
    %v1590 = vadd.f32 %v1589, 1.0
    %v1591 = vrcp.pop %v1590
    %v1592 = vmul.f32 1.0, %v1591
    %v1594 = vrot.slane %v1511, 4
    %v1596 = vadd.f32 %v1086, %v1594
    %v1597 = vxor.u32 %v1596, 2147483648
    %v1598 = vmul.f32 %v1597, 1.442695
    %v1599 = vpow.pop %v1598
    %v1600 = vadd.f32 %v1599, 1.0
    %v1601 = vrcp.pop %v1600
    %v1602 = vmul.f32 1.0, %v1601
    %v1604 = vrot.slane %v1580, 4
    %v1606 = vmul.f32 %v1592, %v1604
    %v1607 = vadd.f32 %v1090, %v1606
    %v1608 = vtanh.pop %v1607
    %v1609 = vsub.f32 1.0, %v1602
    %v1610 = vmul.f32 %v1609, %v1608
    %v1611 = vrot.slane %v1438, 6
    %v1613 = vmul.f32 %v1602, %v1611
    %v1614 = vadd.f32 %v1610, %v1613
    %v1616 = vrot.slane %v1614, 4
    %1618 = vmatprep.subr.mxu0 %v135
    %1619 = vmatpush1.msra.mxu0 %v134
    %1620 = vmatprep.subr.mxu0 %v138
    %1621 = vmatpush1.msra.mxu0 %v137
    %1622 = vmatprep.subr.mxu0 %v141
    %1623 = vmatpush1.msra.mxu0 %v140
    %1624 = vmatprep.subr.mxu0 %v144
    %1625 = vmatpush1.msra.mxu0 %v143
    %1626 = vmatprep.subr.mxu0 %v147
    %1627 = vmatpush1.msra.mxu0 %v146
    %1628 = vmatprep.subr.mxu0 %v150
    %1629 = vmatpush1.msra.mxu0 %v149
    %1630 = vmatprep.subr.mxu0 %v153
    %1631 = vmatpush1.msra.mxu0 %v152
    %1632 = vmatprep.subr.mxu0 %v156
    %1633 = vmatpush1.msra.mxu0 %v155
    %1634 = vmatprep.subr.mxu0 %v159
    %1635 = vmatpush1.msra.mxu0 %v158
    %1636 = vmatprep.subr.mxu0 %v162
    %1637 = vmatpush1.msra.mxu0 %v161
    %1638 = vmatprep.subr.mxu0 %v165
    %1639 = vmatpush1.msra.mxu0 %v164
    %1640 = vmatprep.subr.mxu0 %v168
    %1641 = vmatpush1.msra.mxu0 %v167
    %1642 = vmatprep.subr.mxu0 %v171
    %1643 = vmatpush1.msra.mxu0 %v170
    %1644 = vmatprep.subr.mxu0 %v174
    %1645 = vmatpush1.msra.mxu0 %v173
    %1646 = vmatprep.subr.mxu0 %v177
    %1647 = vmatpush1.msra.mxu0 %v176
    %1648 = vmatprep.subr.mxu0 %v180
    %1649 = vmatpush1.msra.mxu0 %v179
    %1650 = vmatprep.subr.mxu0 0.0
    %1651 = vmatpush1.msra.mxu0 0.0
    %1652 = vmatprep.subr.mxu0 0.0
    %1653 = vmatpush1.msra.mxu0 0.0
    %1654 = vmatprep.subr.mxu0 0.0
    %1655 = vmatpush1.msra.mxu0 0.0
    %1656 = vmatprep.subr.mxu0 0.0
    %1657 = vmatpush1.msra.mxu0 0.0
    %1658 = vmatprep.subr.mxu0 0.0
    %1659 = vmatpush1.msra.mxu0 0.0
    %1660 = vmatprep.subr.mxu0 0.0
    %1661 = vmatpush1.msra.mxu0 0.0
    %1662 = vmatprep.subr.mxu0 0.0
    %1663 = vmatpush1.msra.mxu0 0.0
    %1664 = vmatprep.subr.mxu0 0.0
    %1665 = vmatpush1.msra.mxu0 0.0
    %1666 = vmatprep.subr.mxu0 0.0
    %1667 = vmatpush1.msra.mxu0 0.0
    %1668 = vmatprep.subr.mxu0 0.0
    %1669 = vmatpush1.msra.mxu0 0.0
    %1670 = vmatprep.subr.mxu0 0.0
    %1671 = vmatpush1.msra.mxu0 0.0
    %1672 = vmatprep.subr.mxu0 0.0
    %1673 = vmatpush1.msra.mxu0 0.0
    %1674 = vmatprep.subr.mxu0 0.0
    %1675 = vmatpush1.msra.mxu0 0.0
    %1676 = vmatprep.subr.mxu0 0.0
    %1677 = vmatpush1.msra.mxu0 0.0
    %1678 = vmatprep.subr.mxu0 0.0
    %1679 = vmatpush1.msra.mxu0 0.0
    %1680 = vmatprep.subr.mxu0 0.0
    %1681 = vmatpush1.msra.mxu0 0.0
    %1682 = vmatprep.mubr.f32.mxu0 0.0
    %1683 = vmatmul.mubr.f32.gmra.mrb[0].mxu0 %v1616
    %v1684 = vpop.f32.mrb[0].mxu0
    %v1685 = vadd.f32 %v370, %v1684
    %v1686 = vpop.f32.mrb[0].mxu0
    %v1687 = vadd.f32 %v374, %v1686
    %1688 = vdwg.mxu0
    %1689 = vmatprep.subr.mxu0 0.0
    %1690 = vmatpush1.msra.mxu0 %v136
    %1691 = vmatprep.subr.mxu0 0.0
    %1692 = vmatpush1.msra.mxu0 %v139
    %1693 = vmatprep.subr.mxu0 0.0
    %1694 = vmatpush1.msra.mxu0 %v142
    %1695 = vmatprep.subr.mxu0 0.0
    %1696 = vmatpush1.msra.mxu0 %v145
    %1697 = vmatprep.subr.mxu0 0.0
    %1698 = vmatpush1.msra.mxu0 %v148
    %1699 = vmatprep.subr.mxu0 0.0
    %1700 = vmatpush1.msra.mxu0 %v151
    %1701 = vmatprep.subr.mxu0 0.0
    %1702 = vmatpush1.msra.mxu0 %v154
    %1703 = vmatprep.subr.mxu0 0.0
    %1704 = vmatpush1.msra.mxu0 %v157
    %1705 = vmatprep.subr.mxu0 0.0
    %1706 = vmatpush1.msra.mxu0 %v160
    %1707 = vmatprep.subr.mxu0 0.0
    %1708 = vmatpush1.msra.mxu0 %v163
    %1709 = vmatprep.subr.mxu0 0.0
    %1710 = vmatpush1.msra.mxu0 %v166
    %1711 = vmatprep.subr.mxu0 0.0
    %1712 = vmatpush1.msra.mxu0 %v169
    %1713 = vmatprep.subr.mxu0 0.0
    %1714 = vmatpush1.msra.mxu0 %v172
    %1715 = vmatprep.subr.mxu0 0.0
    %1716 = vmatpush1.msra.mxu0 %v175
    %1717 = vmatprep.subr.mxu0 0.0
    %1718 = vmatpush1.msra.mxu0 %v178
    %1719 = vmatprep.subr.mxu0 0.0
    %1720 = vmatpush1.msra.mxu0 %v181
    %1721 = vmatprep.subr.mxu0 0.0
    %1722 = vmatpush1.msra.mxu0 0.0
    %1723 = vmatprep.subr.mxu0 0.0
    %1724 = vmatpush1.msra.mxu0 0.0
    %1725 = vmatprep.subr.mxu0 0.0
    %1726 = vmatpush1.msra.mxu0 0.0
    %1727 = vmatprep.subr.mxu0 0.0
    %1728 = vmatpush1.msra.mxu0 0.0
    %1729 = vmatprep.subr.mxu0 0.0
    %1730 = vmatpush1.msra.mxu0 0.0
    %1731 = vmatprep.subr.mxu0 0.0
    %1732 = vmatpush1.msra.mxu0 0.0
    %1733 = vmatprep.subr.mxu0 0.0
    %1734 = vmatpush1.msra.mxu0 0.0
    %1735 = vmatprep.subr.mxu0 0.0
    %1736 = vmatpush1.msra.mxu0 0.0
    %1737 = vmatprep.subr.mxu0 0.0
    %1738 = vmatpush1.msra.mxu0 0.0
    %1739 = vmatprep.subr.mxu0 0.0
    %1740 = vmatpush1.msra.mxu0 0.0
    %1741 = vmatprep.subr.mxu0 0.0
    %1742 = vmatpush1.msra.mxu0 0.0
    %1743 = vmatprep.subr.mxu0 0.0
    %1744 = vmatpush1.msra.mxu0 0.0
    %1745 = vmatprep.subr.mxu0 0.0
    %1746 = vmatpush1.msra.mxu0 0.0
    %1747 = vmatprep.subr.mxu0 0.0
    %1748 = vmatpush1.msra.mxu0 0.0
    %1749 = vmatprep.subr.mxu0 0.0
    %1750 = vmatpush1.msra.mxu0 0.0
    %1751 = vmatprep.subr.mxu0 0.0
    %1752 = vmatpush1.msra.mxu0 0.0
    %1753 = vmatprep.mubr.f32.mxu0 0.0
    %1754 = vmatmul.mubr.f32.gmra.mrb[0].mxu0 %v1616
    %v1755 = vpop.f32.mrb[0].mxu0
    %v1756 = vadd.f32 %v378, %v1755
    %v1757 = vpop.f32.mrb[0].mxu0
    %1758 = vdwg.mxu0
    %v1760 = vrot.slane %v1685, 2
    %v1762 = vadd.f32 %v1258, %v1760
    %v1763 = vxor.u32 %v1762, 2147483648
    %v1764 = vmul.f32 %v1763, 1.442695
    %v1765 = vpow.pop %v1764
    %v1766 = vadd.f32 %v1765, 1.0
    %v1767 = vrcp.pop %v1766
    %v1768 = vmul.f32 1.0, %v1767
    %v1770 = vrot.slane %v1687, 2
    %v1772 = vadd.f32 %v1261, %v1770
    %v1773 = vxor.u32 %v1772, 2147483648
    %v1774 = vmul.f32 %v1773, 1.442695
    %v1775 = vpow.pop %v1774
    %v1776 = vadd.f32 %v1775, 1.0
    %v1777 = vrcp.pop %v1776
    %v1778 = vmul.f32 1.0, %v1777
    %v1780 = vrot.slane %v1756, 2
    %v1782 = vmul.f32 %v1768, %v1780
    %v1783 = vadd.f32 %v1264, %v1782
    %v1784 = vtanh.pop %v1783
    %v1785 = vsub.f32 1.0, %v1778
    %v1786 = vmul.f32 %v1785, %v1784
    %v1787 = vrot.slane %v1614, 6
    %v1789 = vmul.f32 %v1778, %v1787
    %v1790 = vadd.f32 %v1786, %v1789
    %v1792 = vrot.slane %v1790, 6
    %v1794 = vsel %vm356, %v543, %v1792
    %v1795 = vrot.slane %v1614, 2
    %v1797 = vsel %vm356, %v726, %v1795
    %v1798 = vsel %vm356, %v902, %v1611
    %v1799 = vrot.slane %v1255, 2
    %v1801 = vsel %vm356, %v1078, %v1799
    %v1802 = vsel %vm356, %v1255, %v1092
    %v1803 = vrot.slane %v902, 2
    %v1805 = vsel %vm356, %v1438, %v1803
    %v1806 = vsel %vm356, %v1614, %v899
    %v1807 = vrot.slane %v543, 2
    %v1809 = vsel %vm356, %v1790, %v1807
    %vm1810 = vcmask 1041408
    %v1811 = vsel %vm1810, %v1794, %v1797
    %vm1812 = vcmask 1043456
    %v1813 = vsel %vm1812, %v1811, %v1798
    %vm1814 = vcmask 1045504
    %v1815 = vsel %vm1814, %v1813, %v1801
    %v1816 = vsel %vm1810, %v1802, %v1805
    %v1817 = vsel %vm1812, %v1816, %v1806
    %v1818 = vsel %vm1814, %v1817, %v1809
    %v1819 = vld [vmem:[#allocation8] sm:$0xff]
    %v1820 = vld [vmem:[#allocation8 + $0x8] sm:$0xff]
    %v1821 = vld [vmem:[#allocation8 + $0x10] sm:$0xff]
    %v1822 = vld [vmem:[#allocation8 + $0x18] sm:$0xff]
    %v1823 = vld [vmem:[#allocation8 + $0x20] sm:$0xff]
    %v1824 = vld [vmem:[#allocation8 + $0x28] sm:$0xff]
    %v1825 = vld [vmem:[#allocation8 + $0x30] sm:$0xff]
    %v1826 = vld [vmem:[#allocation8 + $0x38] sm:$0xff]
    %v1827 = vld [vmem:[#allocation8 + $0x40] sm:$0xff]
    %v1828 = vld [vmem:[#allocation8 + $0x48] sm:$0xff]
    %v1829 = vld [vmem:[#allocation8 + $0x50] sm:$0xff]
    %v1830 = vld [vmem:[#allocation8 + $0x58] sm:$0xff]
    %v1831 = vld [vmem:[#allocation8 + $0x60] sm:$0xff]
    %v1832 = vld [vmem:[#allocation8 + $0x68] sm:$0xff]
    %v1833 = vld [vmem:[#allocation8 + $0x70] sm:$0xff]
    %v1834 = vld [vmem:[#allocation8 + $0x78] sm:$0xff]
    %v1835 = vld [vmem:[%s6] sm:$0x1]
    %v1836 = vld [vmem:[%s7] sm:$0x1]
    %v1838 = vlaneseq
    %v1839 = vshrl.u32 %v1838, 7
    %v1840 = vsub.s32 0, %v1839
    %v1841 = vrot.slane %v1835, %v1840
    %1843 = vmatprep.subr.mxu0 0.0
    %1844 = vmatpush1.msra.mxu0 %v1819
    %1845 = vmatprep.subr.mxu0 0.0
    %1846 = vmatpush1.msra.mxu0 %v1820
    %1847 = vmatprep.subr.mxu0 0.0
    %1848 = vmatpush1.msra.mxu0 %v1821
    %1849 = vmatprep.subr.mxu0 0.0
    %1850 = vmatpush1.msra.mxu0 %v1822
    %1851 = vmatprep.subr.mxu0 0.0
    %1852 = vmatpush1.msra.mxu0 %v1823
    %1853 = vmatprep.subr.mxu0 0.0
    %1854 = vmatpush1.msra.mxu0 %v1824
    %1855 = vmatprep.subr.mxu0 0.0
    %1856 = vmatpush1.msra.mxu0 %v1825
    %1857 = vmatprep.subr.mxu0 0.0
    %1858 = vmatpush1.msra.mxu0 %v1826
    %1859 = vmatprep.subr.mxu0 0.0
    %1860 = vmatpush1.msra.mxu0 %v1827
    %1861 = vmatprep.subr.mxu0 0.0
    %1862 = vmatpush1.msra.mxu0 %v1828
    %1863 = vmatprep.subr.mxu0 0.0
    %1864 = vmatpush1.msra.mxu0 %v1829
    %1865 = vmatprep.subr.mxu0 0.0
    %1866 = vmatpush1.msra.mxu0 %v1830
    %1867 = vmatprep.subr.mxu0 0.0
    %1868 = vmatpush1.msra.mxu0 %v1831
    %1869 = vmatprep.subr.mxu0 0.0
    %1870 = vmatpush1.msra.mxu0 %v1832
    %1871 = vmatprep.subr.mxu0 0.0
    %1872 = vmatpush1.msra.mxu0 %v1833
    %1873 = vmatprep.subr.mxu0 0.0
    %1874 = vmatpush1.msra.mxu0 %v1834
    %1875 = vmatprep.subr.mxu0 0.0
    %1876 = vmatpush1.msra.mxu0 0.0
    %1877 = vmatprep.subr.mxu0 0.0
    %1878 = vmatpush1.msra.mxu0 0.0
    %1879 = vmatprep.subr.mxu0 0.0
    %1880 = vmatpush1.msra.mxu0 0.0
    %1881 = vmatprep.subr.mxu0 0.0
    %1882 = vmatpush1.msra.mxu0 0.0
    %1883 = vmatprep.subr.mxu0 0.0
    %1884 = vmatpush1.msra.mxu0 0.0
    %1885 = vmatprep.subr.mxu0 0.0
    %1886 = vmatpush1.msra.mxu0 0.0
    %1887 = vmatprep.subr.mxu0 0.0
    %1888 = vmatpush1.msra.mxu0 0.0
    %1889 = vmatprep.subr.mxu0 0.0
    %1890 = vmatpush1.msra.mxu0 0.0
    %1891 = vmatprep.subr.mxu0 0.0
    %1892 = vmatpush1.msra.mxu0 0.0
    %1893 = vmatprep.subr.mxu0 0.0
    %1894 = vmatpush1.msra.mxu0 0.0
    %1895 = vmatprep.subr.mxu0 0.0
    %1896 = vmatpush1.msra.mxu0 0.0
    %1897 = vmatprep.subr.mxu0 0.0
    %1898 = vmatpush1.msra.mxu0 0.0
    %1899 = vmatprep.subr.mxu0 0.0
    %1900 = vmatpush1.msra.mxu0 0.0
    %1901 = vmatprep.subr.mxu0 0.0
    %1902 = vmatpush1.msra.mxu0 0.0
    %1903 = vmatprep.subr.mxu0 0.0
    %1904 = vmatpush1.msra.mxu0 0.0
    %1905 = vmatprep.subr.mxu0 0.0
    %1906 = vmatpush1.msra.mxu0 0.0
    %1907 = vmatprep.mubr.f32.mxu0 0.0
    %1908 = vmatmul.mubr.f32.gmra.mrb[0].mxu0 %v1815
    %v1909 = vpop.f32.mrb[0].mxu0
    %v1910 = vadd.f32 %v1841, %v1909
    %v1911 = vpop.f32.mrb[0].mxu0
    %1912 = vmatprep.mubr.f32.mxu0 0.0
    %1913 = vmatmul.mubr.f32.gmra.mrb[0].mxu0 %v1818
    %v1914 = vpop.f32.mrb[0].mxu0
    %v1915 = vadd.f32 %v1841, %v1914
    %v1916 = vpop.f32.mrb[0].mxu0
    %1917 = vdwg.mxu0
    %v1918 = vtanh.pop %v1910
    %v1919 = vtanh.pop %v1915
    %v1921 = vlaneseq
    %v1922 = vshrl.u32 %v1921, 7
    %v1923 = vsub.s32 0, %v1922
    %v1924 = vrot.slane %v1836, %v1923
    %v1926 = vmul.f32 %v1918, %v1924
    %v1927 = vmul.f32 %v1919, %v1924
    %1928 = vadd.xlane.f32.xlu0 %v1926
    %v1929 = vpop.xlane.xlu0 %1928
    %1930 = vadd.xlane.f32.xlu0 %v1927
    %v1931 = vpop.xlane.xlu0 %1930
    %v1932 = vtanh.pop %v1929
    %v1933 = vtanh.pop %v1931
    %v1935 = vrot.slane %v1932, 2
    %v1937 = vrot.slane %v1932, 4
    %v1939 = vrot.slane %v1932, 6
    %v1942 = vrot.slane %v1933, 2
    %v1944 = vrot.slane %v1933, 4
    %v1946 = vrot.slane %v1933, 6
    %vm1948 = vcmask 7168
    %v1949 = vsel %vm1948, %v1932, %v1935
    %vm1950 = vcmask 15360
    %v1951 = vsel %vm1950, %v1949, %v1937
    %vm1952 = vcmask 23552
    %v1953 = vsel %vm1952, %v1951, %v1939
    %vm1954 = vcmask 31744
    %v1955 = vsel %vm1954, %v1953, %v1933
    %vm1956 = vcmask 39936
    %v1957 = vsel %vm1956, %v1955, %v1942
    %vm1958 = vcmask 48128
    %v1959 = vsel %vm1958, %v1957, %v1944
    %vm1960 = vcmask 56320
    %v1961 = vsel %vm1960, %v1959, %v1946
    %vm1962 = vcmask 58368
    %v1963 = vsel %vm1962, %v1961, -inf
    %1964 = vmax.xlane.f32.xlu0 %v1963
    %v1965 = vpop.xlane.xlu0 %1964
    %v1966 = vsub.f32 %v1961, %v1965
    %v1967 = vmul.f32 %v1966, 1.442695
    %v1968 = vpow.pop %v1967
    %v1969 = vsel %vm1962, %v1968, 0.0
    %1970 = vadd.xlane.f32.xlu0 %v1969
    %v1971 = vpop.xlane.xlu0 %1970
    %v1972 = vrcp.pop %v1971
    %v1973 = vmul.f32 %v1968, %v1972
    %1975 = vset.pattern.permute.xlu0 0
    %1976 = vperm.xlu0 %1975, %v1973
    %v1977 = vpop.permute.xlu0 %1976
    %v1979 = vmul.f32 %v1977, %v1794
    %1980 = vset.pattern.permute.xlu0 1
    %1981 = vperm.xlu0 %1980, %v1973
    %v1982 = vpop.permute.xlu0 %1981
    %v1985 = vrot.slane %v1797, 2
    %v1987 = vmul.f32 %v1982, %v1985
    %v1988 = vadd.f32 %v1979, %v1987
    %1989 = vset.pattern.permute.xlu0 2
    %1990 = vperm.xlu0 %1989, %v1973
    %v1991 = vpop.permute.xlu0 %1990
    %v1994 = vrot.slane %v1798, 4
    %v1996 = vmul.f32 %v1991, %v1994
    %v1997 = vadd.f32 %v1988, %v1996
    %1998 = vset.pattern.permute.xlu0 3
    %1999 = vperm.xlu0 %1998, %v1973
    %v2000 = vpop.permute.xlu0 %1999
    %v2003 = vrot.slane %v1801, 6
    %v2005 = vmul.f32 %v2000, %v2003
    %v2006 = vadd.f32 %v1997, %v2005
    %2007 = vset.pattern.permute.xlu0 4
    %2008 = vperm.xlu0 %2007, %v1973
    %v2009 = vpop.permute.xlu0 %2008
    %v2011 = vmul.f32 %v2009, %v1802
    %v2012 = vadd.f32 %v2006, %v2011
    %2013 = vset.pattern.permute.xlu0 5
    %2014 = vperm.xlu0 %2013, %v1973
    %v2015 = vpop.permute.xlu0 %2014
    %v2018 = vrot.slane %v1805, 2
    %v2020 = vmul.f32 %v2015, %v2018
    %v2021 = vadd.f32 %v2012, %v2020
    %2022 = vset.pattern.permute.xlu0 6
    %2023 = vperm.xlu0 %2022, %v1973
    %v2024 = vpop.permute.xlu0 %2023
    %v2027 = vrot.slane %v1806, 4
    %v2029 = vmul.f32 %v2024, %v2027
    %v2030 = vadd.f32 %v2021, %v2029
    %2031 = vset.pattern.permute.xlu0 7
    %2032 = vperm.xlu0 %2031, %v1973
    %v2033 = vpop.permute.xlu0 %2032
    %v2036 = vrot.slane %v1809, 6
    %v2038 = vmul.f32 %v2033, %v2036
    %v2039 = vadd.f32 %v2030, %v2038
    %2040 = vst [vmem:[#allocation10] sm:$0x3] %v2039
    // Predicated region
    $region50: #{sent_att_forward.1} parent=1 // pred_check
      _
    $region51: #{sent_att_forward.1} parent=1 // pred_check_branch
      %2042 = sbr.rel (0) target = $region53
    $region52: #{sent_att_forward.1} parent=1 // pred_region
      %s2044 = ssub.s32 32, 32
      %2045 = vsyncadd [#allocation4], %s2044
      %s2047 = sshll.u32 [#allocation10], 4
      %s2048 = int_to_ptr.vmem [resolvable:$true] %s2047
      %2050 = dma.vmem_to_hbm [thread:$0]  %s2048, 32, %s8, [#allocation4]
    $region53: #{sent_att_forward.1} parent=1 // pred_fallthru
      _
    // Predicated region
    $region54: #{sent_att_forward.1} parent=1 // pred_check
      _
    $region55: #{sent_att_forward.1} parent=1 // pred_check_branch
      %2052 = sbr.rel (0) target = $region57
    $region56: #{sent_att_forward.1} parent=1 // pred_region
      %2053 = dma.done [#allocation4], 32
    $region57: #{sent_att_forward.1} parent=1 // pred_fallthru
      _
    %2054 = vsyncpa [#allocation3], 1
    %2055 = vsyncpa [#allocation6], 1
    %2056 = vsyncpa [#allocation9], 1
    %2057 = vsyncpa [#allocation4], 1

</llo_original>
